<compile_context>
chip_gen: v7x
topology: tpu7x:2x2x1
jax: 0.10.0
libtpu: 0.0.40
codegen_flags: <defaults>
</compile_context>

<pallas_src>
import math
import jax
import jax.numpy as jnp
from jax import lax
from jax.experimental import pallas as pl
from jax.experimental.pallas import tpu as pltpu

# Small, transformer-consistent sizes.
B, S, D = 2, 8, 32          # batch, seq, d_model
H = 4                       # attention heads
DK = D // H                 # head dim
DFF = 64                    # feed-forward hidden
EPS = 1e-6
BS = B * S                  # rows per activation slab
ST = H * BS                 # head-stacked rows (heads stacked along sublanes)
PACK = 128 // D             # rows packed per 128-lane output row (lane-dense store)
OUT_R = BS // PACK          # rows of the packed (OUT_R, PACK*D) output slab
NEG_INF = -1e30


def _layer_norm(v, a, b):
    # torch LayerNorm-as-written: mean(-1), unbiased std (ddof=1), eps added to std.
    mean = jnp.mean(v, axis=-1, keepdims=True)
    diff = v - mean
    var = jnp.sum(diff * diff, axis=-1, keepdims=True) * (1.0 / (D - 1))
    # approx=False keeps the Newton-Raphson-refined reciprocal so we stay tight to
    # the torch reference (approx=True would also pass the 1e-4 tolerance).
    inv = pl.reciprocal(jnp.sqrt(var) + EPS, approx=False)
    return a * diff * inv + b


def encoder_stack_kernel(x_ref, mask_ref, hcm_ref,
                         wqkv_ref, bqkv_ref, wo_ref, bo_ref, ln1a_ref, ln1b_ref,
                         w1_ref, b1_ref, w2_ref, b2_ref, ln2a_ref, ln2b_ref,
                         o_ref, act_ref):
    """One grid step == one encoder layer applied to the resident activation slab."""
    l = pl.program_id(0)

    @pl.when(l == 0)
    def _():                                      # load the input slab once
        act_ref[...] = x_ref[...]

    x = act_ref[...]                              # (BS, D)

    # ---- sublayer 0: multi-head self-attention on LayerNorm(x) -----------------
    ln1 = _layer_norm(x, ln1a_ref[...], ln1b_ref[...])

    # Fused Q|K|V projection (Q weights/bias pre-scaled by 1/sqrt(DK) at prep time).
    qkv = jnp.dot(ln1, wqkv_ref[...],
                  preferred_element_type=jnp.float32) + bqkv_ref[...]     # (BS, 3D)
    q = qkv[:, 0 * D:1 * D]
    k = qkv[:, 1 * D:2 * D]
    v = qkv[:, 2 * D:3 * D]

    # Stack heads along sublanes: (H*BS, D), with K/V masked to their own head's
    # columns so ONE scores matmul and ONE context matmul cover all heads.
    hcm = hcm_ref[...]                            # (ST, D) head-column mask {0,1}
    q_t = jnp.concatenate([q] * H, axis=0)        # (ST, D)
    k_w = jnp.concatenate([k] * H, axis=0) * hcm  # (ST, D)
    v_w = jnp.concatenate([v] * H, axis=0) * hcm  # (ST, D)

    s = lax.dot_general(q_t, k_w, (((1,), (1,)), ((), ())),
                        preferred_element_type=jnp.float32)               # (ST, ST)
    s = s + mask_ref[...]                         # additive (head, batch) block mask
    # Safe: each row's own diagonal is always unmasked -> no fully-masked rows.
    s = s - jnp.max(s, axis=-1, keepdims=True)
    p = jnp.exp(s)                                # masked entries underflow to 0
    p = p * pl.reciprocal(jnp.sum(p, axis=-1, keepdims=True), approx=True)

    ctx_w = jnp.dot(p, v_w, preferred_element_type=jnp.float32)           # (ST, D)
    # Each head's context occupies a disjoint column range -> summing the H sublane
    # blocks IS the "concat heads" tensor, with no lane concatenate.
    ctx = (ctx_w[0 * BS:1 * BS] + ctx_w[1 * BS:2 * BS]
           + ctx_w[2 * BS:3 * BS] + ctx_w[3 * BS:4 * BS])                 # (BS, D)

    x1 = x + jnp.dot(ctx, wo_ref[...],
                     preferred_element_type=jnp.float32) + bo_ref[...]

    # ---- sublayer 1: position-wise FFN on LayerNorm(x1) ------------------------
    ln2 = _layer_norm(x1, ln2a_ref[...], ln2b_ref[...])
    hmid = jnp.maximum(
        jnp.dot(ln2, w1_ref[...], preferred_element_type=jnp.float32) + b1_ref[...],
        0.0)
    y = x1 + jnp.dot(hmid, w2_ref[...],
                     preferred_element_type=jnp.float32) + b2_ref[...]

    act_ref[...] = y                              # carry activation to next layer

    @pl.when(l == pl.num_programs(0) - 1)
    def _():
        # Lane-dense store: pack OUT_R rows of width D into each 128-lane row.
        for j in range(PACK):
            o_ref[:, D * j:D * (j + 1)] = act_ref[OUT_R * j:OUT_R * (j + 1), :]


def prepare_stacked_params(layer_params):
    """One-time (outside the forward path): fuse Q|K|V, fold the 1/sqrt(DK) scale
    into the Q projection, and stack every weight along a leading layer axis."""
    inv = 1.0 / math.sqrt(DK)

    def fuse(p):
        wqkv = jnp.concatenate([p["wq"] * inv, p["wk"], p["wv"]], axis=1)   # (D, 3D)
        bqkv = jnp.concatenate([p["bq"] * inv, p["bk"], p["bv"]], axis=1)   # (1, 3D)
        return (wqkv, bqkv, p["wo"], p["bo"], p["ln1_a"], p["ln1_b"],
                p["w1"], p["b1"], p["w2"], p["b2"], p["ln2_a"], p["ln2_b"])

    per_layer = [fuse(p) for p in layer_params]
    return tuple(jnp.stack(arrs, axis=0) for arrs in zip(*per_layer))


def build_masks():
    """Host-side constants: additive (head, batch) block-diagonal score mask and the
    per-head column mask for the sublane-stacked K/V."""
    r = jnp.arange(ST)
    mask_add = jnp.where((r[:, None] // S) == (r[None, :] // S),
                         0.0, NEG_INF).astype(jnp.float32)                  # (ST, ST)
    hcm = ((jnp.arange(ST)[:, None] // BS) ==
           (jnp.arange(D)[None, :] // DK)).astype(jnp.float32)              # (ST, D)
    return mask_add, hcm


def encoder_forward(x, stacked_params, masks):
    """Apply L stacked encoder layers (L = leading dim of stacked params) to
    x: (B, S, D) in ONE pallas_call.  L=1 reproduces the PyTorch EncoderLayer."""
    num_layers = stacked_params[0].shape[0]
    mask_add, hcm = masks

    def const_spec(shape):
        return pl.BlockSpec(shape, lambda l: (0,) * len(shape))

    def layer_spec(arr):
        trailing = arr.shape[1:]
        return pl.BlockSpec((None,) + trailing,
                            lambda l: (l,) + (0,) * len(trailing))

    in_specs = ([const_spec((BS, D)), const_spec((ST, ST)), const_spec((ST, D))]
                + [layer_spec(w) for w in stacked_params])

    out4 = pl.pallas_call(
        encoder_stack_kernel,
        out_shape=jax.ShapeDtypeStruct((OUT_R, PACK * D), jnp.float32),
        grid_spec=pltpu.PrefetchScalarGridSpec(
            num_scalar_prefetch=0,
            grid=(num_layers,),
            in_specs=in_specs,
            out_specs=pl.BlockSpec((OUT_R, PACK * D), lambda l: (0, 0)),
            scratch_shapes=[pltpu.VMEM((BS, D), jnp.float32)]),
        compiler_params=pltpu.CompilerParams(
            # layer axis is inherently sequential; add a leading "parallel" row axis
            # for v7x once B*S is large enough to split across TensorCores.
            dimension_semantics=("arbitrary",)),
    )(x.reshape(BS, D), mask_add, hcm, *stacked_params)

    # Un-pack the lane-dense (OUT_R, 128) slab back to (B, S, D).
    return out4.reshape(OUT_R, PACK, D).transpose(1, 0, 2).reshape(B, S, D)


def init_params(key):
    ks = jax.random.split(key, 8)
    scale = 0.05
    return {
        "wq": scale * jax.random.normal(ks[0], (D, D), jnp.float32),
        "wk": scale * jax.random.normal(ks[1], (D, D), jnp.float32),
        "wv": scale * jax.random.normal(ks[2], (D, D), jnp.float32),
        "wo": scale * jax.random.normal(ks[3], (D, D), jnp.float32),
        "bq": scale * jax.random.normal(ks[4], (1, D), jnp.float32),
        "bk": jnp.zeros((1, D), jnp.float32),
        "bv": jnp.zeros((1, D), jnp.float32),
        "bo": scale * jax.random.normal(ks[5], (1, D), jnp.float32),
        "w1": scale * jax.random.normal(ks[6], (D, DFF), jnp.float32),
        "b1": jnp.zeros((1, DFF), jnp.float32),
        "w2": scale * jax.random.normal(ks[7], (DFF, D), jnp.float32),
        "b2": jnp.zeros((1, D), jnp.float32),
        # LayerNorm params: ones / zeros as in the PyTorch module __init__
        "ln1_a": jnp.ones((1, D), jnp.float32),
        "ln1_b": jnp.zeros((1, D), jnp.float32),
        "ln2_a": jnp.ones((1, D), jnp.float32),
        "ln2_b": jnp.zeros((1, D), jnp.float32),
    }


def ref_encoder_layer(x, p):
    """Pure-JAX reference mirroring the PyTorch forward (one EncoderLayer)."""
    def ln(v, a, b):
        m = jnp.mean(v, axis=-1, keepdims=True)
        var = jnp.sum((v - m) ** 2, axis=-1, keepdims=True) / (D - 1)
        return a * (v - m) / (jnp.sqrt(var) + EPS) + b

    l1 = ln(x, p["ln1_a"], p["ln1_b"])
    q = l1 @ p["wq"] + p["bq"]
    k = l1 @ p["wk"] + p["bk"]
    v = l1 @ p["wv"] + p["bv"]
    qh = q.reshape(B, S, H, DK).transpose(0, 2, 1, 3)
    kh = k.reshape(B, S, H, DK).transpose(0, 2, 1, 3)
    vh = v.reshape(B, S, H, DK).transpose(0, 2, 1, 3)
    s = jnp.einsum("bhqd,bhkd->bhqk", qh, kh) / math.sqrt(DK)
    pattn = jax.nn.softmax(s, axis=-1)
    ctx = jnp.einsum("bhqk,bhkd->bhqd", pattn, vh).transpose(0, 2, 1, 3).reshape(B, S, D)
    x1 = x + (ctx @ p["wo"] + p["bo"])
    l2 = ln(x1, p["ln2_a"], p["ln2_b"])
    ff = jnp.maximum(l2 @ p["w1"] + p["b1"], 0.0) @ p["w2"] + p["b2"]
    return x1 + ff


if __name__ == "__main__":
    key = jax.random.PRNGKey(0)
    kx, kp = jax.random.split(key)
    x = jax.random.normal(kx, (B, S, D), jnp.float32)
    params = init_params(kp)

    masks = build_masks()                                   # one-time host constants

    # --- the PyTorch module: a single EncoderLayer ------------------------------
    stacked1 = prepare_stacked_params([params])             # one-time weight prep
    out = jax.block_until_ready(encoder_forward(x, stacked1, masks))
    ref = ref_encoder_layer(x, params)
    assert out.shape == (B, S, D)
    err1 = float(jnp.max(jnp.abs(out - ref)))
    assert jnp.allclose(out, ref, atol=1e-4, rtol=1e-4), err1

    # --- amortization demo: two stacked layers, still ONE pallas_call -----------
    params_b = init_params(jax.random.PRNGKey(1))
    stacked2 = prepare_stacked_params([params, params_b])
    out2 = jax.block_until_ready(encoder_forward(x, stacked2, masks))
    ref2 = ref_encoder_layer(ref_encoder_layer(x, params), params_b)
    err2 = float(jnp.max(jnp.abs(out2 - ref2)))
    assert jnp.allclose(out2, ref2, atol=2e-4, rtol=2e-4), err2

    print("KERNEL_OK")
</pallas_src>

<mosaic_0001>
module attributes {stable_mosaic.version = 11 : i64} {
  func.func @encoder_stack_kernel(%arg0: i32, %arg1: memref<16x32xf32, #tpu.memory_space<vmem>>, %arg2: memref<64x64xf32, #tpu.memory_space<vmem>>, %arg3: memref<64x32xf32, #tpu.memory_space<vmem>>, %arg4: memref<1x32x96xf32, #tpu.memory_space<vmem>>, %arg5: memref<1x1x96xf32, #tpu.memory_space<vmem>>, %arg6: memref<1x32x32xf32, #tpu.memory_space<vmem>>, %arg7: memref<1x1x32xf32, #tpu.memory_space<vmem>>, %arg8: memref<1x1x32xf32, #tpu.memory_space<vmem>>, %arg9: memref<1x1x32xf32, #tpu.memory_space<vmem>>, %arg10: memref<1x32x64xf32, #tpu.memory_space<vmem>>, %arg11: memref<1x1x64xf32, #tpu.memory_space<vmem>>, %arg12: memref<1x64x32xf32, #tpu.memory_space<vmem>>, %arg13: memref<1x1x32xf32, #tpu.memory_space<vmem>>, %arg14: memref<1x1x32xf32, #tpu.memory_space<vmem>>, %arg15: memref<1x1x32xf32, #tpu.memory_space<vmem>>, %arg16: memref<4x128xf32, #tpu.memory_space<vmem>>, %arg17: memref<16x32xf32, #tpu.memory_space<vmem>>) attributes {dimension_semantics = [#tpu.dimension_semantics<arbitrary>], iteration_bounds = array<i64: 1>, scalar_prefetch = 0 : i64, scratch_operands = 1 : i64, tpu.core_type = #tpu.core_type<tc>, window_params = [{pipeline_mode = #tpu.pipeline_mode<synchronous>, transform_indices = @transform_0, window_bounds = array<i64: 16, 32>}, {pipeline_mode = #tpu.pipeline_mode<synchronous>, transform_indices = @transform_1, window_bounds = array<i64: 64, 64>}, {pipeline_mode = #tpu.pipeline_mode<synchronous>, transform_indices = @transform_2, window_bounds = array<i64: 64, 32>}, {transform_indices = @transform_3, window_bounds = array<i64: 1, 32, 96>}, {transform_indices = @transform_4, window_bounds = array<i64: 1, 1, 96>}, {transform_indices = @transform_5, window_bounds = array<i64: 1, 32, 32>}, {transform_indices = @transform_6, window_bounds = array<i64: 1, 1, 32>}, {transform_indices = @transform_7, window_bounds = array<i64: 1, 1, 32>}, {transform_indices = @transform_8, window_bounds = array<i64: 1, 1, 32>}, {transform_indices = @transform_9, window_bounds = array<i64: 1, 32, 64>}, {transform_indices = @transform_10, window_bounds = array<i64: 1, 1, 64>}, {transform_indices = @transform_11, window_bounds = array<i64: 1, 64, 32>}, {transform_indices = @transform_12, window_bounds = array<i64: 1, 1, 32>}, {transform_indices = @transform_13, window_bounds = array<i64: 1, 1, 32>}, {transform_indices = @transform_14, window_bounds = array<i64: 1, 1, 32>}, {pipeline_mode = #tpu.pipeline_mode<synchronous>, transform_indices = @transform_15, window_bounds = array<i64: 4, 128>}]} {
    %c0_i32 = arith.constant 0 : i32
    %0 = arith.cmpi eq, %arg0, %c0_i32 : i32
    %1 = arith.extui %0 : i1 to i32
    %c0_i32_0 = arith.constant 0 : i32
    %2 = arith.cmpi ne, %1, %c0_i32_0 : i32
    scf.if %2 {
      %c0_64 = arith.constant 0 : index
      %c0_65 = arith.constant 0 : index
      %120 = vector.load %arg1[%c0_64, %c0_65] : memref<16x32xf32, #tpu.memory_space<vmem>>, vector<16x32xf32>
      %c0_66 = arith.constant 0 : index
      %c0_67 = arith.constant 0 : index
      %121 = vector.load %arg17[%c0_66, %c0_67] : memref<16x32xf32, #tpu.memory_space<vmem>>, vector<16x32xf32>
      tpu.vector_store %arg17[%c0_66, %c0_67], %120 {strides = array<i32>} : memref<16x32xf32, #tpu.memory_space<vmem>>, vector<16x32xf32>,
    } else {
    }
    %c0 = arith.constant 0 : index
    %c0_1 = arith.constant 0 : index
    %3 = vector.load %arg17[%c0, %c0_1] : memref<16x32xf32, #tpu.memory_space<vmem>>, vector<16x32xf32>
    %c0_2 = arith.constant 0 : index
    %c0_3 = arith.constant 0 : index
    %c0_4 = arith.constant 0 : index
    %4 = vector.load %arg8[%c0_2, %c0_3, %c0_4] : memref<1x1x32xf32, #tpu.memory_space<vmem>>, vector<1x1x32xf32>
    %5 = vector.shape_cast %4 : vector<1x1x32xf32> to vector<1x32xf32>
    %c0_5 = arith.constant 0 : index
    %c0_6 = arith.constant 0 : index
    %c0_7 = arith.constant 0 : index
    %6 = vector.load %arg9[%c0_5, %c0_6, %c0_7] : memref<1x1x32xf32, #tpu.memory_space<vmem>>, vector<1x1x32xf32>
    %7 = vector.shape_cast %6 : vector<1x1x32xf32> to vector<1x32xf32>
    %cst = arith.constant dense<0.000000e+00> : vector<16xf32>
    %8 = vector.multi_reduction <add>, %3, %cst [1] : vector<16x32xf32> to vector<16xf32>
    %9 = vector.shape_cast %8 : vector<16xf32> to vector<16x1xf32>
    %cst_8 = arith.constant 3.200000e+01 : f32
    %10 = vector.broadcast %cst_8 : f32 to vector<16x1xf32>
    %11 = arith.divf %9, %10 : vector<16x1xf32>
    %12 = vector.broadcast %11 : vector<16x1xf32> to vector<16x32xf32>
    %13 = arith.subf %3, %12 : vector<16x32xf32>
    %14 = arith.mulf %13, %13 : vector<16x32xf32>
    %cst_9 = arith.constant dense<0.000000e+00> : vector<16xf32>
    %15 = vector.multi_reduction <add>, %14, %cst_9 [1] : vector<16x32xf32> to vector<16xf32>
    %16 = vector.shape_cast %15 : vector<16xf32> to vector<16x1xf32>
    %cst_10 = arith.constant 0.0322580636 : f32
    %17 = vector.broadcast %cst_10 : f32 to vector<16x1xf32>
    %18 = arith.mulf %16, %17 : vector<16x1xf32>
    %19 = math.sqrt %18 : vector<16x1xf32>
    %cst_11 = arith.constant 9.99999997E-7 : f32
    %20 = vector.broadcast %cst_11 : f32 to vector<16x1xf32>
    %21 = arith.addf %19, %20 : vector<16x1xf32>
    %22 = tpu.reciprocal %21 : vector<16x1xf32> -> vector<16x1xf32>
    %23 = vector.broadcast %5 : vector<1x32xf32> to vector<16x32xf32>
    %24 = arith.mulf %23, %13 : vector<16x32xf32>
    %25 = vector.broadcast %22 : vector<16x1xf32> to vector<16x32xf32>
    %26 = arith.mulf %24, %25 : vector<16x32xf32>
    %27 = vector.broadcast %7 : vector<1x32xf32> to vector<16x32xf32>
    %28 = arith.addf %26, %27 : vector<16x32xf32>
    %c0_12 = arith.constant 0 : index
    %c0_13 = arith.constant 0 : index
    %c0_14 = arith.constant 0 : index
    %29 = vector.load %arg4[%c0_12, %c0_13, %c0_14] : memref<1x32x96xf32, #tpu.memory_space<vmem>>, vector<1x32x96xf32>
    %30 = vector.shape_cast %29 : vector<1x32x96xf32> to vector<32x96xf32>
    %cst_15 = arith.constant dense<0.000000e+00> : vector<16x96xf32>
    %31 = tpu.matmul %28, %30, %cst_15 {dimension_numbers = #tpu.dot_dimension_numbers<[1], [0], [0], [1], [0, 0, 1, 1], [], []>} : vector<16x32xf32>, vector<32x96xf32>, vector<16x96xf32> -> vector<16x96xf32>
    %c0_16 = arith.constant 0 : index
    %c0_17 = arith.constant 0 : index
    %c0_18 = arith.constant 0 : index
    %32 = vector.load %arg5[%c0_16, %c0_17, %c0_18] : memref<1x1x96xf32, #tpu.memory_space<vmem>>, vector<1x1x96xf32>
    %33 = vector.shape_cast %32 : vector<1x1x96xf32> to vector<1x96xf32>
    %34 = vector.broadcast %33 : vector<1x96xf32> to vector<16x96xf32>
    %35 = arith.addf %31, %34 : vector<16x96xf32>
    %36 = vector.extract_strided_slice %35 {offsets = [0, 0], sizes = [16, 32], strides = [1, 1]} : vector<16x96xf32> to vector<16x32xf32>
    %37 = vector.extract_strided_slice %35 {offsets = [0, 32], sizes = [16, 32], strides = [1, 1]} : vector<16x96xf32> to vector<16x32xf32>
    %38 = vector.extract_strided_slice %35 {offsets = [0, 64], sizes = [16, 32], strides = [1, 1]} : vector<16x96xf32> to vector<16x32xf32>
    %c0_19 = arith.constant 0 : index
    %c0_20 = arith.constant 0 : index
    %39 = vector.load %arg3[%c0_19, %c0_20] : memref<64x32xf32, #tpu.memory_space<vmem>>, vector<64x32xf32>
    %40 = tpu.concatenate %36, %36, %36, %36 in 0 : vector<16x32xf32>, vector<16x32xf32>, vector<16x32xf32>, vector<16x32xf32> -> vector<64x32xf32>
    %41 = tpu.concatenate %37, %37, %37, %37 in 0 : vector<16x32xf32>, vector<16x32xf32>, vector<16x32xf32>, vector<16x32xf32> -> vector<64x32xf32>
    %42 = arith.mulf %41, %39 : vector<64x32xf32>
    %43 = tpu.concatenate %38, %38, %38, %38 in 0 : vector<16x32xf32>, vector<16x32xf32>, vector<16x32xf32>, vector<16x32xf32> -> vector<64x32xf32>
    %44 = arith.mulf %43, %39 : vector<64x32xf32>
    %cst_21 = arith.constant dense<0.000000e+00> : vector<64x64xf32>
    %45 = tpu.matmul %40, %42, %cst_21 {dimension_numbers = #tpu.dot_dimension_numbers<[1], [1], [0], [0], [0, 0, 1, 0], [], []>} : vector<64x32xf32>, vector<64x32xf32>, vector<64x64xf32> -> vector<64x64xf32>
    %c0_22 = arith.constant 0 : index
    %c0_23 = arith.constant 0 : index
    %46 = vector.load %arg2[%c0_22, %c0_23] : memref<64x64xf32, #tpu.memory_space<vmem>>, vector<64x64xf32>
    %47 = arith.addf %45, %46 : vector<64x64xf32>
    %cst_24 = arith.constant dense<0xFF800000> : vector<64xf32>
    %48 = vector.multi_reduction <maximumf>, %47, %cst_24 [1] : vector<64x64xf32> to vector<64xf32>
    %49 = vector.shape_cast %48 : vector<64xf32> to vector<64x1xf32>
    %50 = vector.broadcast %49 : vector<64x1xf32> to vector<64x64xf32>
    %51 = arith.subf %47, %50 : vector<64x64xf32>
    %52 = math.exp %51 : vector<64x64xf32>
    %cst_25 = arith.constant dense<0.000000e+00> : vector<64xf32>
    %53 = vector.multi_reduction <add>, %52, %cst_25 [1] : vector<64x64xf32> to vector<64xf32>
    %54 = vector.shape_cast %53 : vector<64xf32> to vector<64x1xf32>
    %55 = tpu.reciprocal %54 {approx = true} : vector<64x1xf32> -> vector<64x1xf32>
    %56 = vector.broadcast %55 : vector<64x1xf32> to vector<64x64xf32>
    %57 = arith.mulf %52, %56 : vector<64x64xf32>
    %cst_26 = arith.constant dense<0.000000e+00> : vector<64x32xf32>
    %58 = tpu.matmul %57, %44, %cst_26 {dimension_numbers = #tpu.dot_dimension_numbers<[1], [0], [0], [1], [0, 0, 1, 1], [], []>} : vector<64x64xf32>, vector<64x32xf32>, vector<64x32xf32> -> vector<64x32xf32>
    %59 = vector.extract_strided_slice %58 {offsets = [0, 0], sizes = [16, 32], strides = [1, 1]} : vector<64x32xf32> to vector<16x32xf32>
    %60 = vector.extract_strided_slice %58 {offsets = [16, 0], sizes = [16, 32], strides = [1, 1]} : vector<64x32xf32> to vector<16x32xf32>
    %61 = arith.addf %59, %60 : vector<16x32xf32>
    %62 = vector.extract_strided_slice %58 {offsets = [32, 0], sizes = [16, 32], strides = [1, 1]} : vector<64x32xf32> to vector<16x32xf32>
    %63 = arith.addf %61, %62 : vector<16x32xf32>
    %64 = vector.extract_strided_slice %58 {offsets = [48, 0], sizes = [16, 32], strides = [1, 1]} : vector<64x32xf32> to vector<16x32xf32>
    %65 = arith.addf %63, %64 : vector<16x32xf32>
    %c0_27 = arith.constant 0 : index
    %c0_28 = arith.constant 0 : index
    %c0_29 = arith.constant 0 : index
    %66 = vector.load %arg6[%c0_27, %c0_28, %c0_29] : memref<1x32x32xf32, #tpu.memory_space<vmem>>, vector<1x32x32xf32>
    %67 = vector.shape_cast %66 : vector<1x32x32xf32> to vector<32x32xf32>
    %cst_30 = arith.constant dense<0.000000e+00> : vector<16x32xf32>
    %68 = tpu.matmul %65, %67, %cst_30 {dimension_numbers = #tpu.dot_dimension_numbers<[1], [0], [0], [1], [0, 0, 1, 1], [], []>} : vector<16x32xf32>, vector<32x32xf32>, vector<16x32xf32> -> vector<16x32xf32>
    %69 = arith.addf %3, %68 : vector<16x32xf32>
    %c0_31 = arith.constant 0 : index
    %c0_32 = arith.constant 0 : index
    %c0_33 = arith.constant 0 : index
    %70 = vector.load %arg7[%c0_31, %c0_32, %c0_33] : memref<1x1x32xf32, #tpu.memory_space<vmem>>, vector<1x1x32xf32>
    %71 = vector.shape_cast %70 : vector<1x1x32xf32> to vector<1x32xf32>
    %72 = vector.broadcast %71 : vector<1x32xf32> to vector<16x32xf32>
    %73 = arith.addf %69, %72 : vector<16x32xf32>
    %c0_34 = arith.constant 0 : index
    %c0_35 = arith.constant 0 : index
    %c0_36 = arith.constant 0 : index
    %74 = vector.load %arg14[%c0_34, %c0_35, %c0_36] : memref<1x1x32xf32, #tpu.memory_space<vmem>>, vector<1x1x32xf32>
    %75 = vector.shape_cast %74 : vector<1x1x32xf32> to vector<1x32xf32>
    %c0_37 = arith.constant 0 : index
    %c0_38 = arith.constant 0 : index
    %c0_39 = arith.constant 0 : index
    %76 = vector.load %arg15[%c0_37, %c0_38, %c0_39] : memref<1x1x32xf32, #tpu.memory_space<vmem>>, vector<1x1x32xf32>
    %77 = vector.shape_cast %76 : vector<1x1x32xf32> to vector<1x32xf32>
    %cst_40 = arith.constant dense<0.000000e+00> : vector<16xf32>
    %78 = vector.multi_reduction <add>, %73, %cst_40 [1] : vector<16x32xf32> to vector<16xf32>
    %79 = vector.shape_cast %78 : vector<16xf32> to vector<16x1xf32>
    %cst_41 = arith.constant 3.200000e+01 : f32
    %80 = vector.broadcast %cst_41 : f32 to vector<16x1xf32>
    %81 = arith.divf %79, %80 : vector<16x1xf32>
    %82 = vector.broadcast %81 : vector<16x1xf32> to vector<16x32xf32>
    %83 = arith.subf %73, %82 : vector<16x32xf32>
    %84 = arith.mulf %83, %83 : vector<16x32xf32>
    %cst_42 = arith.constant dense<0.000000e+00> : vector<16xf32>
    %85 = vector.multi_reduction <add>, %84, %cst_42 [1] : vector<16x32xf32> to vector<16xf32>
    %86 = vector.shape_cast %85 : vector<16xf32> to vector<16x1xf32>
    %cst_43 = arith.constant 0.0322580636 : f32
    %87 = vector.broadcast %cst_43 : f32 to vector<16x1xf32>
    %88 = arith.mulf %86, %87 : vector<16x1xf32>
    %89 = math.sqrt %88 : vector<16x1xf32>
    %cst_44 = arith.constant 9.99999997E-7 : f32
    %90 = vector.broadcast %cst_44 : f32 to vector<16x1xf32>
    %91 = arith.addf %89, %90 : vector<16x1xf32>
    %92 = tpu.reciprocal %91 : vector<16x1xf32> -> vector<16x1xf32>
    %93 = vector.broadcast %75 : vector<1x32xf32> to vector<16x32xf32>
    %94 = arith.mulf %93, %83 : vector<16x32xf32>
    %95 = vector.broadcast %92 : vector<16x1xf32> to vector<16x32xf32>
    %96 = arith.mulf %94, %95 : vector<16x32xf32>
    %97 = vector.broadcast %77 : vector<1x32xf32> to vector<16x32xf32>
    %98 = arith.addf %96, %97 : vector<16x32xf32>
    %c0_45 = arith.constant 0 : index
    %c0_46 = arith.constant 0 : index
    %c0_47 = arith.constant 0 : index
    %99 = vector.load %arg10[%c0_45, %c0_46, %c0_47] : memref<1x32x64xf32, #tpu.memory_space<vmem>>, vector<1x32x64xf32>
    %100 = vector.shape_cast %99 : vector<1x32x64xf32> to vector<32x64xf32>
    %cst_48 = arith.constant dense<0.000000e+00> : vector<16x64xf32>
    %101 = tpu.matmul %98, %100, %cst_48 {dimension_numbers = #tpu.dot_dimension_numbers<[1], [0], [0], [1], [0, 0, 1, 1], [], []>} : vector<16x32xf32>, vector<32x64xf32>, vector<16x64xf32> -> vector<16x64xf32>
    %c0_49 = arith.constant 0 : index
    %c0_50 = arith.constant 0 : index
    %c0_51 = arith.constant 0 : index
    %102 = vector.load %arg11[%c0_49, %c0_50, %c0_51] : memref<1x1x64xf32, #tpu.memory_space<vmem>>, vector<1x1x64xf32>
    %103 = vector.shape_cast %102 : vector<1x1x64xf32> to vector<1x64xf32>
    %104 = vector.broadcast %103 : vector<1x64xf32> to vector<16x64xf32>
    %105 = arith.addf %101, %104 : vector<16x64xf32>
    %cst_52 = arith.constant 0.000000e+00 : f32
    %106 = vector.broadcast %cst_52 : f32 to vector<16x64xf32>
    %107 = arith.maximumf %105, %106 : vector<16x64xf32>
    %c0_53 = arith.constant 0 : index
    %c0_54 = arith.constant 0 : index
    %c0_55 = arith.constant 0 : index
    %108 = vector.load %arg12[%c0_53, %c0_54, %c0_55] : memref<1x64x32xf32, #tpu.memory_space<vmem>>, vector<1x64x32xf32>
    %109 = vector.shape_cast %108 : vector<1x64x32xf32> to vector<64x32xf32>
    %cst_56 = arith.constant dense<0.000000e+00> : vector<16x32xf32>
    %110 = tpu.matmul %107, %109, %cst_56 {dimension_numbers = #tpu.dot_dimension_numbers<[1], [0], [0], [1], [0, 0, 1, 1], [], []>} : vector<16x64xf32>, vector<64x32xf32>, vector<16x32xf32> -> vector<16x32xf32>
    %111 = arith.addf %73, %110 : vector<16x32xf32>
    %c0_57 = arith.constant 0 : index
    %c0_58 = arith.constant 0 : index
    %c0_59 = arith.constant 0 : index
    %112 = vector.load %arg13[%c0_57, %c0_58, %c0_59] : memref<1x1x32xf32, #tpu.memory_space<vmem>>, vector<1x1x32xf32>
    %113 = vector.shape_cast %112 : vector<1x1x32xf32> to vector<1x32xf32>
    %114 = vector.broadcast %113 : vector<1x32xf32> to vector<16x32xf32>
    %115 = arith.addf %111, %114 : vector<16x32xf32>
    %c0_60 = arith.constant 0 : index
    %c0_61 = arith.constant 0 : index
    %116 = vector.load %arg17[%c0_60, %c0_61] : memref<16x32xf32, #tpu.memory_space<vmem>>, vector<16x32xf32>
    tpu.vector_store %arg17[%c0_60, %c0_61], %115 {strides = array<i32>} : memref<16x32xf32, #tpu.memory_space<vmem>>, vector<16x32xf32>,
    %c0_i32_62 = arith.constant 0 : i32
    %117 = arith.cmpi eq, %arg0, %c0_i32_62 : i32
    %118 = arith.extui %117 : i1 to i32
    %c0_i32_63 = arith.constant 0 : i32
    %119 = arith.cmpi ne, %118, %c0_i32_63 : i32
    scf.if %119 {
      %c0_64 = arith.constant 0 : index
      %c0_65 = arith.constant 0 : index
      %120 = vector.load %arg17[%c0_64, %c0_65] : memref<16x32xf32, #tpu.memory_space<vmem>>, vector<4x32xf32>
      %c0_66 = arith.constant 0 : index
      %c0_67 = arith.constant 0 : index
      %121 = vector.load %arg16[%c0_66, %c0_67] : memref<4x128xf32, #tpu.memory_space<vmem>>, vector<4x32xf32>
      tpu.vector_store %arg16[%c0_66, %c0_67], %120 {strides = array<i32>} : memref<4x128xf32, #tpu.memory_space<vmem>>, vector<4x32xf32>,
      %c4 = arith.constant 4 : index
      %c0_68 = arith.constant 0 : index
      %122 = vector.load %arg17[%c4, %c0_68] : memref<16x32xf32, #tpu.memory_space<vmem>>, vector<4x32xf32>
      %c0_69 = arith.constant 0 : index
      %c32 = arith.constant 32 : index
      %123 = vector.load %arg16[%c0_69, %c32] : memref<4x128xf32, #tpu.memory_space<vmem>>, vector<4x32xf32>
      tpu.vector_store %arg16[%c0_69, %c32], %122 {strides = array<i32>} : memref<4x128xf32, #tpu.memory_space<vmem>>, vector<4x32xf32>,
      %c8 = arith.constant 8 : index
      %c0_70 = arith.constant 0 : index
      %124 = vector.load %arg17[%c8, %c0_70] : memref<16x32xf32, #tpu.memory_space<vmem>>, vector<4x32xf32>
      %c0_71 = arith.constant 0 : index
      %c64 = arith.constant 64 : index
      %125 = vector.load %arg16[%c0_71, %c64] : memref<4x128xf32, #tpu.memory_space<vmem>>, vector<4x32xf32>
      tpu.vector_store %arg16[%c0_71, %c64], %124 {strides = array<i32>} : memref<4x128xf32, #tpu.memory_space<vmem>>, vector<4x32xf32>,
      %c12 = arith.constant 12 : index
      %c0_72 = arith.constant 0 : index
      %126 = vector.load %arg17[%c12, %c0_72] : memref<16x32xf32, #tpu.memory_space<vmem>>, vector<4x32xf32>
      %c0_73 = arith.constant 0 : index
      %c96 = arith.constant 96 : index
      %127 = vector.load %arg16[%c0_73, %c96] : memref<4x128xf32, #tpu.memory_space<vmem>>, vector<4x32xf32>
      tpu.vector_store %arg16[%c0_73, %c96], %126 {strides = array<i32>} : memref<4x128xf32, #tpu.memory_space<vmem>>, vector<4x32xf32>,
    } else {
    }
    return
  }
  func.func @transform_0(%arg0: i32) -> (i32, i32) {
    %c0_i32 = arith.constant 0 : i32
    %c0_i32_0 = arith.constant 0 : i32
    %c0_i32_1 = arith.constant 0 : i32
    return %c0_i32, %c0_i32_0 : i32, i32
  }
  func.func @transform_1(%arg0: i32) -> (i32, i32) {
    %c0_i32 = arith.constant 0 : i32
    %c0_i32_0 = arith.constant 0 : i32
    %c0_i32_1 = arith.constant 0 : i32
    return %c0_i32, %c0_i32_0 : i32, i32
  }
  func.func @transform_2(%arg0: i32) -> (i32, i32) {
    %c0_i32 = arith.constant 0 : i32
    %c0_i32_0 = arith.constant 0 : i32
    %c0_i32_1 = arith.constant 0 : i32
    return %c0_i32, %c0_i32_0 : i32, i32
  }
  func.func @transform_3(%arg0: i32) -> (i32, i32, i32) {
    %c0_i32 = arith.constant 0 : i32
    %c0_i32_0 = arith.constant 0 : i32
    %c0_i32_1 = arith.constant 0 : i32
    return %arg0, %c0_i32, %c0_i32_0 : i32, i32, i32
  }
  func.func @transform_4(%arg0: i32) -> (i32, i32, i32) {
    %c0_i32 = arith.constant 0 : i32
    %c0_i32_0 = arith.constant 0 : i32
    %c0_i32_1 = arith.constant 0 : i32
    return %arg0, %c0_i32, %c0_i32_0 : i32, i32, i32
  }
  func.func @transform_5(%arg0: i32) -> (i32, i32, i32) {
    %c0_i32 = arith.constant 0 : i32
    %c0_i32_0 = arith.constant 0 : i32
    %c0_i32_1 = arith.constant 0 : i32
    return %arg0, %c0_i32, %c0_i32_0 : i32, i32, i32
  }
  func.func @transform_6(%arg0: i32) -> (i32, i32, i32) {
    %c0_i32 = arith.constant 0 : i32
    %c0_i32_0 = arith.constant 0 : i32
    %c0_i32_1 = arith.constant 0 : i32
    return %arg0, %c0_i32, %c0_i32_0 : i32, i32, i32
  }
  func.func @transform_7(%arg0: i32) -> (i32, i32, i32) {
    %c0_i32 = arith.constant 0 : i32
    %c0_i32_0 = arith.constant 0 : i32
    %c0_i32_1 = arith.constant 0 : i32
    return %arg0, %c0_i32, %c0_i32_0 : i32, i32, i32
  }
  func.func @transform_8(%arg0: i32) -> (i32, i32, i32) {
    %c0_i32 = arith.constant 0 : i32
    %c0_i32_0 = arith.constant 0 : i32
    %c0_i32_1 = arith.constant 0 : i32
    return %arg0, %c0_i32, %c0_i32_0 : i32, i32, i32
  }
  func.func @transform_9(%arg0: i32) -> (i32, i32, i32) {
    %c0_i32 = arith.constant 0 : i32
    %c0_i32_0 = arith.constant 0 : i32
    %c0_i32_1 = arith.constant 0 : i32
    return %arg0, %c0_i32, %c0_i32_0 : i32, i32, i32
  }
  func.func @transform_10(%arg0: i32) -> (i32, i32, i32) {
    %c0_i32 = arith.constant 0 : i32
    %c0_i32_0 = arith.constant 0 : i32
    %c0_i32_1 = arith.constant 0 : i32
    return %arg0, %c0_i32, %c0_i32_0 : i32, i32, i32
  }
  func.func @transform_11(%arg0: i32) -> (i32, i32, i32) {
    %c0_i32 = arith.constant 0 : i32
    %c0_i32_0 = arith.constant 0 : i32
    %c0_i32_1 = arith.constant 0 : i32
    return %arg0, %c0_i32, %c0_i32_0 : i32, i32, i32
  }
  func.func @transform_12(%arg0: i32) -> (i32, i32, i32) {
    %c0_i32 = arith.constant 0 : i32
    %c0_i32_0 = arith.constant 0 : i32
    %c0_i32_1 = arith.constant 0 : i32
    return %arg0, %c0_i32, %c0_i32_0 : i32, i32, i32
  }
  func.func @transform_13(%arg0: i32) -> (i32, i32, i32) {
    %c0_i32 = arith.constant 0 : i32
    %c0_i32_0 = arith.constant 0 : i32
    %c0_i32_1 = arith.constant 0 : i32
    return %arg0, %c0_i32, %c0_i32_0 : i32, i32, i32
  }
  func.func @transform_14(%arg0: i32) -> (i32, i32, i32) {
    %c0_i32 = arith.constant 0 : i32
    %c0_i32_0 = arith.constant 0 : i32
    %c0_i32_1 = arith.constant 0 : i32
    return %arg0, %c0_i32, %c0_i32_0 : i32, i32, i32
  }
  func.func @transform_15(%arg0: i32) -> (i32, i32) {
    %c0_i32 = arith.constant 0 : i32
    %c0_i32_0 = arith.constant 0 : i32
    %c0_i32_1 = arith.constant 0 : i32
    return %c0_i32, %c0_i32_0 : i32, i32
  }
}

</mosaic_0001>

<llo_original>
// kernel: tpu_custom_call.1
$region0: #{tpu_custom_call.1}
  #allocation0 [shape = 'u32[]', space=smem, size = 0x4, offset = 0x4, fixed_abs, tag = 'smem constant byte address 0x4 - core index']
  #allocation1 [shape = 'u32[144,128]{1,0:T(1,128)}', space=vmem, size = 0x12000, scoped, tag = 'internal scratch']
  #allocation2 [shape = 'f32[16,32]{1,0:T(8,128)}', space=vmem, size = 0x2000, scoped, tag = 'scratch operand']
  %s0 = inlined_call_operand.hbm [shape: f32[16,32], index: 0, kind: input, shape index: {}]
  %s1 = inlined_call_operand.vmem [shape: f32[64,64], index: 1, kind: input, shape index: {}]
  %s2 = inlined_call_operand.vmem [shape: f32[64,32], index: 2, kind: input, shape index: {}]
  %s3 = inlined_call_operand.vmem [shape: f32[1,32,96], index: 3, kind: input, shape index: {}]
  %s4 = inlined_call_operand.vmem [shape: f32[1,1,96], index: 4, kind: input, shape index: {}]
  %s5 = inlined_call_operand.vmem [shape: f32[1,32,32], index: 5, kind: input, shape index: {}]
  %s6 = inlined_call_operand.vmem [shape: f32[1,1,32], index: 6, kind: input, shape index: {}]
  %s7 = inlined_call_operand.vmem [shape: f32[1,1,32], index: 7, kind: input, shape index: {}]
  %s8 = inlined_call_operand.vmem [shape: f32[1,1,32], index: 8, kind: input, shape index: {}]
  %s9 = inlined_call_operand.vmem [shape: f32[1,32,64], index: 9, kind: input, shape index: {}]
  %s10 = inlined_call_operand.vmem [shape: f32[1,1,64], index: 10, kind: input, shape index: {}]
  %s11 = inlined_call_operand.vmem [shape: f32[1,64,32], index: 11, kind: input, shape index: {}]
  %s12 = inlined_call_operand.vmem [shape: f32[1,1,32], index: 12, kind: input, shape index: {}]
  %s13 = inlined_call_operand.vmem [shape: f32[1,1,32], index: 13, kind: input, shape index: {}]
  %s14 = inlined_call_operand.vmem [shape: f32[1,1,32], index: 14, kind: input, shape index: {}]
  %s15 = inlined_call_operand.hbm [shape: f32[4,128], index: 15, kind: output, shape index: {}]
  %s16 = sld [smem:[#allocation0]]
  $region82: #{tpu_custom_call.1} parent=0
    _
  %s18 = ssub.s32 1, %s16
  %s19 = scalar_select 0, %s18, %s16
  $region1: #{tpu_custom_call.1} parent=0
    #allocation3 [shape = 'u8[8192]{0}', space=vmem, size = 0x2000, scoped, tag = 'input window, operand 0, single buffered']
    #allocation4 [shape = 's32[1]{0}', space=sflag, size = 0x4, scoped, tag = 'scoped memory for tpu_custom_call.1']
    #allocation5 [shape = 's32[1]{0}', space=sflag, size = 0x4, scoped, tag = 'scoped memory for tpu_custom_call.1']
    #allocation6 [shape = 'u8[2048]{0}', space=vmem, size = 0x800, scoped, tag = 'output window, operand 0, single buffered']
    %20 = vsyncpa [#allocation4], 0
    %21 = vsyncpa [#allocation5], 0
    // Predicated region
    $region2: #{tpu_custom_call.1} parent=1 // pred_check
      _
    $region3: #{tpu_custom_call.1} parent=1 // pred_check_branch
      %23 = sbr.rel (0) target = $region5
    $region4: #{tpu_custom_call.1} parent=1 // pred_region
      %s25 = ssub.s32 256, 256
      %26 = vsyncadd [#allocation4], %s25
      %s27 = sshll.u32 [#allocation3], 4
      %s28 = int_to_ptr.vmem [resolvable:$true] %s27
      %33 = dma.hbm_to_vmem [thread:$0]  %s0, 256, %s28, [#allocation4], 128, 128, 8
    $region5: #{tpu_custom_call.1} parent=1 // pred_fallthru
      _
    // Predicated region
    $region6: #{tpu_custom_call.1} parent=1 // pred_check
      _
    $region7: #{tpu_custom_call.1} parent=1 // pred_check_branch
      %35 = sbr.rel (0) target = $region9
    $region8: #{tpu_custom_call.1} parent=1 // pred_region
      _
    $region9: #{tpu_custom_call.1} parent=1 // pred_fallthru
      _
    // Predicated region
    $region10: #{tpu_custom_call.1} parent=1 // pred_check
      _
    $region11: #{tpu_custom_call.1} parent=1 // pred_check_branch
      %37 = sbr.rel (0) target = $region13
    $region12: #{tpu_custom_call.1} parent=1 // pred_region
      _
    $region13: #{tpu_custom_call.1} parent=1 // pred_fallthru
      _
    // Predicated region
    $region14: #{tpu_custom_call.1} parent=1 // pred_check
      _
    $region15: #{tpu_custom_call.1} parent=1 // pred_check_branch
      %39 = sbr.rel (0) target = $region17
    $region16: #{tpu_custom_call.1} parent=1 // pred_region
      _
    $region17: #{tpu_custom_call.1} parent=1 // pred_fallthru
      _
    // Predicated region
    $region18: #{tpu_custom_call.1} parent=1 // pred_check
      _
    $region19: #{tpu_custom_call.1} parent=1 // pred_check_branch
      %41 = sbr.rel (0) target = $region21
    $region20: #{tpu_custom_call.1} parent=1 // pred_region
      _
    $region21: #{tpu_custom_call.1} parent=1 // pred_fallthru
      _
    // Predicated region
    $region22: #{tpu_custom_call.1} parent=1 // pred_check
      _
    $region23: #{tpu_custom_call.1} parent=1 // pred_check_branch
      %43 = sbr.rel (0) target = $region25
    $region24: #{tpu_custom_call.1} parent=1 // pred_region
      _
    $region25: #{tpu_custom_call.1} parent=1 // pred_fallthru
      _
    // Predicated region
    $region26: #{tpu_custom_call.1} parent=1 // pred_check
      _
    $region27: #{tpu_custom_call.1} parent=1 // pred_check_branch
      %45 = sbr.rel (0) target = $region29
    $region28: #{tpu_custom_call.1} parent=1 // pred_region
      _
    $region29: #{tpu_custom_call.1} parent=1 // pred_fallthru
      _
    // Predicated region
    $region30: #{tpu_custom_call.1} parent=1 // pred_check
      _
    $region31: #{tpu_custom_call.1} parent=1 // pred_check_branch
      %47 = sbr.rel (0) target = $region33
    $region32: #{tpu_custom_call.1} parent=1 // pred_region
      _
    $region33: #{tpu_custom_call.1} parent=1 // pred_fallthru
      _
    // Predicated region
    $region34: #{tpu_custom_call.1} parent=1 // pred_check
      _
    $region35: #{tpu_custom_call.1} parent=1 // pred_check_branch
      %49 = sbr.rel (0) target = $region37
    $region36: #{tpu_custom_call.1} parent=1 // pred_region
      _
    $region37: #{tpu_custom_call.1} parent=1 // pred_fallthru
      _
    // Predicated region
    $region38: #{tpu_custom_call.1} parent=1 // pred_check
      _
    $region39: #{tpu_custom_call.1} parent=1 // pred_check_branch
      %51 = sbr.rel (0) target = $region41
    $region40: #{tpu_custom_call.1} parent=1 // pred_region
      _
    $region41: #{tpu_custom_call.1} parent=1 // pred_fallthru
      _
    // Predicated region
    $region42: #{tpu_custom_call.1} parent=1 // pred_check
      _
    $region43: #{tpu_custom_call.1} parent=1 // pred_check_branch
      %53 = sbr.rel (0) target = $region45
    $region44: #{tpu_custom_call.1} parent=1 // pred_region
      _
    $region45: #{tpu_custom_call.1} parent=1 // pred_fallthru
      _
    // Predicated region
    $region46: #{tpu_custom_call.1} parent=1 // pred_check
      _
    $region47: #{tpu_custom_call.1} parent=1 // pred_check_branch
      %55 = sbr.rel (0) target = $region49
    $region48: #{tpu_custom_call.1} parent=1 // pred_region
      _
    $region49: #{tpu_custom_call.1} parent=1 // pred_fallthru
      _
    // Predicated region
    $region50: #{tpu_custom_call.1} parent=1 // pred_check
      _
    $region51: #{tpu_custom_call.1} parent=1 // pred_check_branch
      %57 = sbr.rel (0) target = $region53
    $region52: #{tpu_custom_call.1} parent=1 // pred_region
      _
    $region53: #{tpu_custom_call.1} parent=1 // pred_fallthru
      _
    // Predicated region
    $region54: #{tpu_custom_call.1} parent=1 // pred_check
      _
    $region55: #{tpu_custom_call.1} parent=1 // pred_check_branch
      %59 = sbr.rel (0) target = $region57
    $region56: #{tpu_custom_call.1} parent=1 // pred_region
      _
    $region57: #{tpu_custom_call.1} parent=1 // pred_fallthru
      _
    // Predicated region
    $region58: #{tpu_custom_call.1} parent=1 // pred_check
      _
    $region59: #{tpu_custom_call.1} parent=1 // pred_check_branch
      %61 = sbr.rel (0) target = $region61
    $region60: #{tpu_custom_call.1} parent=1 // pred_region
      _
    $region61: #{tpu_custom_call.1} parent=1 // pred_fallthru
      _
    // Predicated region
    $region62: #{tpu_custom_call.1} parent=1 // pred_check
      _
    $region63: #{tpu_custom_call.1} parent=1 // pred_check_branch
      %63 = sbr.rel (0) target = $region65
    $region64: #{tpu_custom_call.1} parent=1 // pred_region
      %64 = dma.done [#allocation4], 256
    $region65: #{tpu_custom_call.1} parent=1 // pred_fallthru
      _
    %p65 = scmp.eq.s32.totalorder 0, 0
    // Predicated region
    $region66: #{tpu_custom_call.1} parent=1 // pred_check
      %p66 = pneg %p65
    $region67: #{tpu_custom_call.1} parent=1 // pred_check_branch
      %68 = sbr.rel (%p66) target = $region69
    $region68: #{tpu_custom_call.1} parent=1 // pred_region
      %v69 = vld [vmem:[#allocation3] sm:$0xff]
      %v70 = vld [vmem:[#allocation3 + $0x8] sm:$0xff]
      %vm71 = vcmask 261120
      %72 = vst.msk [vmem:[#allocation2] sm:$0xff] %vm71, %v69
      %73 = vst.msk [vmem:[#allocation2 + $0x8] sm:$0xff] %vm71, %v70
    $region69: #{tpu_custom_call.1} parent=1 // pred_fallthru
      _
    %v74 = vld [vmem:[#allocation2] sm:$0xff]
    %v75 = vld [vmem:[#allocation2 + $0x8] sm:$0xff]
    %v76 = vld [vmem:[%s7] sm:$0x1]
    %v77 = vld [vmem:[%s8] sm:$0x1]
    %vm78 = vcmask 261120
    %v79 = vsel %vm78, %v74, 0.0
    %80 = vadd.xlane.f32.xlu0 %v79
    %v81 = vpop.xlane.xlu0 %80
    %v82 = vsel %vm78, %v75, 0.0
    %83 = vadd.xlane.f32.xlu0 %v82
    %v84 = vpop.xlane.xlu0 %83
    %v85 = vrcp.pop 32.0
    %v86 = vmul.f32 %v81, %v85
    %v87 = vmul.f32 %v84, %v85
    %v88 = vsub.f32 %v74, %v86
    %v89 = vsub.f32 %v75, %v87
    %v90 = vmul.f32 %v88, %v88
    %v91 = vmul.f32 %v89, %v89
    %v92 = vsel %vm78, %v90, 0.0
    %93 = vadd.xlane.f32.xlu0 %v92
    %v94 = vpop.xlane.xlu0 %93
    %v95 = vsel %vm78, %v91, 0.0
    %96 = vadd.xlane.f32.xlu0 %v95
    %v97 = vpop.xlane.xlu0 %96
    %v98 = vmul.f32 %v94, 0.032258064
    %v99 = vmul.f32 %v97, 0.032258064
    %v100 = vrsqrt.pop %v98
    %v101 = vmul.f32 %v98, %v100
    %vm102 = vcmp.eq.f32.partialorder %v98, inf
    %v103 = vsel %vm102, %v98, %v101
    %vm104 = vcmp.eq.f32.partialorder %v98, 0.0
    %v105 = vand.u32 %v98, 2147483648
    %v106 = vsel %vm104, %v105, %v103
    %v107 = vrsqrt.pop %v99
    %v108 = vmul.f32 %v99, %v107
    %vm109 = vcmp.eq.f32.partialorder %v99, inf
    %v110 = vsel %vm109, %v99, %v108
    %vm111 = vcmp.eq.f32.partialorder %v99, 0.0
    %v112 = vand.u32 %v99, 2147483648
    %v113 = vsel %vm111, %v112, %v110
    %v114 = vadd.f32 %v106, 1e-06
    %v115 = vadd.f32 %v113, 1e-06
    %v116 = vrcp.pop %v114
    %v117 = vrcp.pop %v115
    %v119 = vlaneseq
    %v120 = vshrl.u32 %v119, 7
    %v121 = vsub.s32 0, %v120
    %v122 = vrot.slane %v76, %v121
    %v124 = vmul.f32 %v122, %v88
    %v125 = vmul.f32 %v122, %v89
    %v126 = vmul.f32 %v124, %v116
    %v127 = vmul.f32 %v125, %v117
    %v129 = vlaneseq
    %v130 = vshrl.u32 %v129, 7
    %v131 = vsub.s32 0, %v130
    %v132 = vrot.slane %v77, %v131
    %v134 = vadd.f32 %v126, %v132
    %v135 = vadd.f32 %v127, %v132
    %v136 = vld [vmem:[%s3] sm:$0xff]
    %v137 = vld [vmem:[%s3 + $0x8] sm:$0xff]
    %v138 = vld [vmem:[%s3 + $0x10] sm:$0xff]
    %v139 = vld [vmem:[%s3 + $0x18] sm:$0xff]
    %v140 = vld [vmem:[%s4] sm:$0x1]
    %v142 = vlaneseq
    %v143 = vshrl.u32 %v142, 7
    %v144 = vsub.s32 0, %v143
    %v145 = vrot.slane %v140, %v144
    %v148 = vsel %vm78, %v134, 0
    %v151 = vsel %vm78, %v135, 0
    %153 = vmatprep.subr.mxu0 0.0
    %154 = vmatpush1.msra.mxu0 %v136
    %155 = vmatprep.subr.mxu0 0.0
    %156 = vmatpush1.msra.mxu0 %v137
    %157 = vmatprep.subr.mxu0 0.0
    %158 = vmatpush1.msra.mxu0 %v138
    %159 = vmatprep.subr.mxu0 0.0
    %160 = vmatpush1.msra.mxu0 %v139
    %161 = vmatprep.subr.mxu0 0.0
    %162 = vmatpush1.msra.mxu0 0.0
    %163 = vmatprep.subr.mxu0 0.0
    %164 = vmatpush1.msra.mxu0 0.0
    %165 = vmatprep.subr.mxu0 0.0
    %166 = vmatpush1.msra.mxu0 0.0
    %167 = vmatprep.subr.mxu0 0.0
    %168 = vmatpush1.msra.mxu0 0.0
    %169 = vmatprep.subr.mxu0 0.0
    %170 = vmatpush1.msra.mxu0 0.0
    %171 = vmatprep.subr.mxu0 0.0
    %172 = vmatpush1.msra.mxu0 0.0
    %173 = vmatprep.subr.mxu0 0.0
    %174 = vmatpush1.msra.mxu0 0.0
    %175 = vmatprep.subr.mxu0 0.0
    %176 = vmatpush1.msra.mxu0 0.0
    %177 = vmatprep.subr.mxu0 0.0
    %178 = vmatpush1.msra.mxu0 0.0
    %179 = vmatprep.subr.mxu0 0.0
    %180 = vmatpush1.msra.mxu0 0.0
    %181 = vmatprep.subr.mxu0 0.0
    %182 = vmatpush1.msra.mxu0 0.0
    %183 = vmatprep.subr.mxu0 0.0
    %184 = vmatpush1.msra.mxu0 0.0
    %185 = vmatprep.subr.mxu0 0.0
    %186 = vmatpush1.msra.mxu0 0.0
    %187 = vmatprep.subr.mxu0 0.0
    %188 = vmatpush1.msra.mxu0 0.0
    %189 = vmatprep.subr.mxu0 0.0
    %190 = vmatpush1.msra.mxu0 0.0
    %191 = vmatprep.subr.mxu0 0.0
    %192 = vmatpush1.msra.mxu0 0.0
    %193 = vmatprep.subr.mxu0 0.0
    %194 = vmatpush1.msra.mxu0 0.0
    %195 = vmatprep.subr.mxu0 0.0
    %196 = vmatpush1.msra.mxu0 0.0
    %197 = vmatprep.subr.mxu0 0.0
    %198 = vmatpush1.msra.mxu0 0.0
    %199 = vmatprep.subr.mxu0 0.0
    %200 = vmatpush1.msra.mxu0 0.0
    %201 = vmatprep.subr.mxu0 0.0
    %202 = vmatpush1.msra.mxu0 0.0
    %203 = vmatprep.subr.mxu0 0.0
    %204 = vmatpush1.msra.mxu0 0.0
    %205 = vmatprep.subr.mxu0 0.0
    %206 = vmatpush1.msra.mxu0 0.0
    %207 = vmatprep.subr.mxu0 0.0
    %208 = vmatpush1.msra.mxu0 0.0
    %209 = vmatprep.subr.mxu0 0.0
    %210 = vmatpush1.msra.mxu0 0.0
    %211 = vmatprep.subr.mxu0 0.0
    %212 = vmatpush1.msra.mxu0 0.0
    %213 = vmatprep.subr.mxu0 0.0
    %214 = vmatpush1.msra.mxu0 0.0
    %215 = vmatprep.subr.mxu0 0.0
    %216 = vmatpush1.msra.mxu0 0.0
    %217 = vmatprep.mubr.f32.mxu0 0.0
    %218 = vmatmul.mubr.f32.gmra.mrb[0].mxu0 %v148
    %v219 = vpop.f32.mrb[0].mxu0
    %v220 = vadd.f32 %v145, %v219
    %v221 = vpop.f32.mrb[0].mxu0
    %222 = vmatprep.mubr.f32.mxu0 0.0
    %223 = vmatmul.mubr.f32.gmra.mrb[0].mxu0 %v151
    %v224 = vpop.f32.mrb[0].mxu0
    %v225 = vadd.f32 %v145, %v224
    %v226 = vpop.f32.mrb[0].mxu0
    %227 = vdwg.mxu0
    %v228 = vld [vmem:[%s2] sm:$0xff]
    %v229 = vld [vmem:[%s2 + $0x8] sm:$0xff]
    %v230 = vld [vmem:[%s2 + $0x10] sm:$0xff]
    %v231 = vld [vmem:[%s2 + $0x18] sm:$0xff]
    %v232 = vld [vmem:[%s2 + $0x20] sm:$0xff]
    %v233 = vld [vmem:[%s2 + $0x28] sm:$0xff]
    %v234 = vld [vmem:[%s2 + $0x30] sm:$0xff]
    %v235 = vld [vmem:[%s2 + $0x38] sm:$0xff]
    %244 = vrot.lane.b32.xlu0 %v228, 32
    %v245 = vpop.permute.xlu0 %244
    %246 = vrot.lane.b32.xlu0 %v229, 32
    %v247 = vpop.permute.xlu0 %246
    %248 = vrot.lane.b32.xlu0 %v230, 32
    %v249 = vpop.permute.xlu0 %248
    %250 = vrot.lane.b32.xlu0 %v231, 32
    %v251 = vpop.permute.xlu0 %250
    %252 = vrot.lane.b32.xlu0 %v232, 32
    %v253 = vpop.permute.xlu0 %252
    %254 = vrot.lane.b32.xlu0 %v233, 32
    %v255 = vpop.permute.xlu0 %254
    %256 = vrot.lane.b32.xlu0 %v234, 32
    %v257 = vpop.permute.xlu0 %256
    %258 = vrot.lane.b32.xlu0 %v235, 32
    %v259 = vpop.permute.xlu0 %258
    %v268 = vmul.f32 %v220, %v245
    %v269 = vmul.f32 %v225, %v247
    %v270 = vmul.f32 %v220, %v249
    %v271 = vmul.f32 %v225, %v251
    %v272 = vmul.f32 %v220, %v253
    %v273 = vmul.f32 %v225, %v255
    %v274 = vmul.f32 %v220, %v257
    %v275 = vmul.f32 %v225, %v259
    %276 = vrot.lane.b32.xlu0 %v228, 64
    %v277 = vpop.permute.xlu0 %276
    %278 = vrot.lane.b32.xlu0 %v229, 64
    %v279 = vpop.permute.xlu0 %278
    %280 = vrot.lane.b32.xlu0 %v230, 64
    %v281 = vpop.permute.xlu0 %280
    %282 = vrot.lane.b32.xlu0 %v231, 64
    %v283 = vpop.permute.xlu0 %282
    %284 = vrot.lane.b32.xlu0 %v232, 64
    %v285 = vpop.permute.xlu0 %284
    %286 = vrot.lane.b32.xlu0 %v233, 64
    %v287 = vpop.permute.xlu0 %286
    %288 = vrot.lane.b32.xlu0 %v234, 64
    %v289 = vpop.permute.xlu0 %288
    %290 = vrot.lane.b32.xlu0 %v235, 64
    %v291 = vpop.permute.xlu0 %290
    %v300 = vmul.f32 %v220, %v277
    %v301 = vmul.f32 %v225, %v279
    %v302 = vmul.f32 %v220, %v281
    %v303 = vmul.f32 %v225, %v283
    %v304 = vmul.f32 %v220, %v285
    %v305 = vmul.f32 %v225, %v287
    %v306 = vmul.f32 %v220, %v289
    %v307 = vmul.f32 %v225, %v291
    %v308 = vld [vmem:[%s1] sm:$0xff]
    %v309 = vld [vmem:[%s1 + $0x8] sm:$0xff]
    %v310 = vld [vmem:[%s1 + $0x10] sm:$0xff]
    %v311 = vld [vmem:[%s1 + $0x18] sm:$0xff]
    %v312 = vld [vmem:[%s1 + $0x20] sm:$0xff]
    %v313 = vld [vmem:[%s1 + $0x28] sm:$0xff]
    %v314 = vld [vmem:[%s1 + $0x30] sm:$0xff]
    %v315 = vld [vmem:[%s1 + $0x38] sm:$0xff]
    %324 = vrot.lane.b32.xlu0 %v268, 96
    %v325 = vpop.permute.xlu0 %324
    %326 = vrot.lane.b32.xlu0 %v269, 96
    %v327 = vpop.permute.xlu0 %326
    %328 = vrot.lane.b32.xlu0 %v270, 96
    %v329 = vpop.permute.xlu0 %328
    %330 = vrot.lane.b32.xlu0 %v271, 96
    %v331 = vpop.permute.xlu0 %330
    %332 = vrot.lane.b32.xlu0 %v272, 96
    %v333 = vpop.permute.xlu0 %332
    %334 = vrot.lane.b32.xlu0 %v273, 96
    %v335 = vpop.permute.xlu0 %334
    %336 = vrot.lane.b32.xlu0 %v274, 96
    %v337 = vpop.permute.xlu0 %336
    %338 = vrot.lane.b32.xlu0 %v275, 96
    %v339 = vpop.permute.xlu0 %338
    %v341 = vsel %vm78, %v220, 0
    %v344 = vsel %vm78, %v225, 0
    %v346 = vsel %vm78, %v325, 0
    %v348 = vsel %vm78, %v327, 0
    %v350 = vsel %vm78, %v329, 0
    %v352 = vsel %vm78, %v331, 0
    %v354 = vsel %vm78, %v333, 0
    %v356 = vsel %vm78, %v335, 0
    %v358 = vsel %vm78, %v337, 0
    %v360 = vsel %vm78, %v339, 0
    %362 = vmatprep.subr.mxu0 0.0
    %363 = vmatpush1.xpose.msra.mxu0 %v346
    %364 = vmatprep.subr.mxu0 0.0
    %365 = vmatpush1.xpose.msra.mxu0 %v348
    %366 = vmatprep.subr.mxu0 0.0
    %367 = vmatpush1.xpose.msra.mxu0 %v350
    %368 = vmatprep.subr.mxu0 0.0
    %369 = vmatpush1.xpose.msra.mxu0 %v352
    %370 = vmatprep.subr.mxu0 0.0
    %371 = vmatpush1.xpose.msra.mxu0 %v354
    %372 = vmatprep.subr.mxu0 0.0
    %373 = vmatpush1.xpose.msra.mxu0 %v356
    %374 = vmatprep.subr.mxu0 0.0
    %375 = vmatpush1.xpose.msra.mxu0 %v358
    %376 = vmatprep.subr.mxu0 0.0
    %377 = vmatpush1.xpose.msra.mxu0 %v360
    %378 = vmatprep.subr.mxu0 0.0
    %379 = vmatpush1.xpose.msra.mxu0 0.0
    %380 = vmatprep.subr.mxu0 0.0
    %381 = vmatpush1.xpose.msra.mxu0 0.0
    %382 = vmatprep.subr.mxu0 0.0
    %383 = vmatpush1.xpose.msra.mxu0 0.0
    %384 = vmatprep.subr.mxu0 0.0
    %385 = vmatpush1.xpose.msra.mxu0 0.0
    %386 = vmatprep.subr.mxu0 0.0
    %387 = vmatpush1.xpose.msra.mxu0 0.0
    %388 = vmatprep.subr.mxu0 0.0
    %389 = vmatpush1.xpose.msra.mxu0 0.0
    %390 = vmatprep.subr.mxu0 0.0
    %391 = vmatpush1.xpose.msra.mxu0 0.0
    %392 = vmatprep.subr.mxu0 0.0
    %393 = vmatpush1.xpose.msra.mxu0 0.0
    %394 = vmatprep.subr.mxu0 0.0
    %395 = vmatpush1.xpose.msra.mxu0 0.0
    %396 = vmatprep.subr.mxu0 0.0
    %397 = vmatpush1.xpose.msra.mxu0 0.0
    %398 = vmatprep.subr.mxu0 0.0
    %399 = vmatpush1.xpose.msra.mxu0 0.0
    %400 = vmatprep.subr.mxu0 0.0
    %401 = vmatpush1.xpose.msra.mxu0 0.0
    %402 = vmatprep.subr.mxu0 0.0
    %403 = vmatpush1.xpose.msra.mxu0 0.0
    %404 = vmatprep.subr.mxu0 0.0
    %405 = vmatpush1.xpose.msra.mxu0 0.0
    %406 = vmatprep.subr.mxu0 0.0
    %407 = vmatpush1.xpose.msra.mxu0 0.0
    %408 = vmatprep.subr.mxu0 0.0
    %409 = vmatpush1.xpose.msra.mxu0 0.0
    %410 = vmatprep.subr.mxu0 0.0
    %411 = vmatpush1.xpose.msra.mxu0 0.0
    %412 = vmatprep.subr.mxu0 0.0
    %413 = vmatpush1.xpose.msra.mxu0 0.0
    %414 = vmatprep.subr.mxu0 0.0
    %415 = vmatpush1.xpose.msra.mxu0 0.0
    %416 = vmatprep.subr.mxu0 0.0
    %417 = vmatpush1.xpose.msra.mxu0 0.0
    %418 = vmatprep.subr.mxu0 0.0
    %419 = vmatpush1.xpose.msra.mxu0 0.0
    %420 = vmatprep.subr.mxu0 0.0
    %421 = vmatpush1.xpose.msra.mxu0 0.0
    %422 = vmatprep.subr.mxu0 0.0
    %423 = vmatpush1.xpose.msra.mxu0 0.0
    %424 = vmatprep.subr.mxu0 0.0
    %425 = vmatpush1.xpose.msra.mxu0 0.0
    %426 = vmatprep.mubr.f32.mxu0 0.0
    %427 = vmatmul.mubr.f32.gmra.mrb[0].mxu0 %v341
    %v428 = vpop.f32.mrb[0].mxu0
    %v429 = vadd.f32 %v308, %v428
    %v430 = vpop.f32.mrb[0].mxu0
    %431 = vmatprep.mubr.f32.mxu0 0.0
    %432 = vmatmul.mubr.f32.gmra.mrb[0].mxu0 %v344
    %v433 = vpop.f32.mrb[0].mxu0
    %v434 = vadd.f32 %v309, %v433
    %v435 = vpop.f32.mrb[0].mxu0
    %436 = vmatprep.mubr.f32.mxu0 0.0
    %437 = vmatmul.mubr.f32.gmra.mrb[0].mxu0 %v341
    %v438 = vpop.f32.mrb[0].mxu0
    %v439 = vadd.f32 %v310, %v438
    %v440 = vpop.f32.mrb[0].mxu0
    %441 = vmatprep.mubr.f32.mxu0 0.0
    %442 = vmatmul.mubr.f32.gmra.mrb[0].mxu0 %v344
    %v443 = vpop.f32.mrb[0].mxu0
    %v444 = vadd.f32 %v311, %v443
    %v445 = vpop.f32.mrb[0].mxu0
    %446 = vmatprep.mubr.f32.mxu0 0.0
    %447 = vmatmul.mubr.f32.gmra.mrb[0].mxu0 %v341
    %v448 = vpop.f32.mrb[0].mxu0
    %v449 = vadd.f32 %v312, %v448
    %v450 = vpop.f32.mrb[0].mxu0
    %451 = vmatprep.mubr.f32.mxu0 0.0
    %452 = vmatmul.mubr.f32.gmra.mrb[0].mxu0 %v344
    %v453 = vpop.f32.mrb[0].mxu0
    %v454 = vadd.f32 %v313, %v453
    %v455 = vpop.f32.mrb[0].mxu0
    %456 = vmatprep.mubr.f32.mxu0 0.0
    %457 = vmatmul.mubr.f32.gmra.mrb[0].mxu0 %v341
    %v458 = vpop.f32.mrb[0].mxu0
    %v459 = vadd.f32 %v314, %v458
    %v460 = vpop.f32.mrb[0].mxu0
    %461 = vmatprep.mubr.f32.mxu0 0.0
    %462 = vmatmul.mubr.f32.gmra.mrb[0].mxu0 %v344
    %v463 = vpop.f32.mrb[0].mxu0
    %v464 = vadd.f32 %v315, %v463
    %v465 = vpop.f32.mrb[0].mxu0
    %466 = vdwg.mxu0
    %vm467 = vcmask 523264
    %v468 = vsel %vm467, %v429, -inf
    %469 = vmax.xlane.f32.xlu0 %v468
    %v470 = vpop.xlane.xlu0 %469
    %v471 = vsel %vm467, %v434, -inf
    %472 = vmax.xlane.f32.xlu0 %v471
    %v473 = vpop.xlane.xlu0 %472
    %v474 = vsel %vm467, %v439, -inf
    %475 = vmax.xlane.f32.xlu0 %v474
    %v476 = vpop.xlane.xlu0 %475
    %v477 = vsel %vm467, %v444, -inf
    %478 = vmax.xlane.f32.xlu0 %v477
    %v479 = vpop.xlane.xlu0 %478
    %v480 = vsel %vm467, %v449, -inf
    %481 = vmax.xlane.f32.xlu0 %v480
    %v482 = vpop.xlane.xlu0 %481
    %v483 = vsel %vm467, %v454, -inf
    %484 = vmax.xlane.f32.xlu0 %v483
    %v485 = vpop.xlane.xlu0 %484
    %v486 = vsel %vm467, %v459, -inf
    %487 = vmax.xlane.f32.xlu0 %v486
    %v488 = vpop.xlane.xlu0 %487
    %v489 = vsel %vm467, %v464, -inf
    %490 = vmax.xlane.f32.xlu0 %v489
    %v491 = vpop.xlane.xlu0 %490
    %v492 = vsub.f32 %v429, %v470
    %v493 = vsub.f32 %v434, %v473
    %v494 = vsub.f32 %v439, %v476
    %v495 = vsub.f32 %v444, %v479
    %v496 = vsub.f32 %v449, %v482
    %v497 = vsub.f32 %v454, %v485
    %v498 = vsub.f32 %v459, %v488
    %v499 = vsub.f32 %v464, %v491
    %v500 = vmul.f32 %v492, 1.442695
    %v501 = vpow.pop %v500
    %v502 = vmul.f32 %v493, 1.442695
    %v503 = vpow.pop %v502
    %v504 = vmul.f32 %v494, 1.442695
    %v505 = vpow.pop %v504
    %v506 = vmul.f32 %v495, 1.442695
    %v507 = vpow.pop %v506
    %v508 = vmul.f32 %v496, 1.442695
    %v509 = vpow.pop %v508
    %v510 = vmul.f32 %v497, 1.442695
    %v511 = vpow.pop %v510
    %v512 = vmul.f32 %v498, 1.442695
    %v513 = vpow.pop %v512
    %v514 = vmul.f32 %v499, 1.442695
    %v515 = vpow.pop %v514
    %v516 = vsel %vm467, %v501, 0.0
    %517 = vadd.xlane.f32.xlu0 %v516
    %v518 = vpop.xlane.xlu0 %517
    %v519 = vsel %vm467, %v503, 0.0
    %520 = vadd.xlane.f32.xlu0 %v519
    %v521 = vpop.xlane.xlu0 %520
    %v522 = vsel %vm467, %v505, 0.0
    %523 = vadd.xlane.f32.xlu0 %v522
    %v524 = vpop.xlane.xlu0 %523
    %v525 = vsel %vm467, %v507, 0.0
    %526 = vadd.xlane.f32.xlu0 %v525
    %v527 = vpop.xlane.xlu0 %526
    %v528 = vsel %vm467, %v509, 0.0
    %529 = vadd.xlane.f32.xlu0 %v528
    %v530 = vpop.xlane.xlu0 %529
    %v531 = vsel %vm467, %v511, 0.0
    %532 = vadd.xlane.f32.xlu0 %v531
    %v533 = vpop.xlane.xlu0 %532
    %v534 = vsel %vm467, %v513, 0.0
    %535 = vadd.xlane.f32.xlu0 %v534
    %v536 = vpop.xlane.xlu0 %535
    %v537 = vsel %vm467, %v515, 0.0
    %538 = vadd.xlane.f32.xlu0 %v537
    %v539 = vpop.xlane.xlu0 %538
    %v540 = vrcp.pop %v518
    %v541 = vrcp.pop %v521
    %v542 = vrcp.pop %v524
    %v543 = vrcp.pop %v527
    %v544 = vrcp.pop %v530
    %v545 = vrcp.pop %v533
    %v546 = vrcp.pop %v536
    %v547 = vrcp.pop %v539
    %v548 = vmul.f32 %v501, %v540
    %v549 = vmul.f32 %v503, %v541
    %v550 = vmul.f32 %v505, %v542
    %v551 = vmul.f32 %v507, %v543
    %v552 = vmul.f32 %v509, %v544
    %v553 = vmul.f32 %v511, %v545
    %v554 = vmul.f32 %v513, %v546
    %v555 = vmul.f32 %v515, %v547
    %564 = vrot.lane.b32.xlu0 %v300, 64
    %v565 = vpop.permute.xlu0 %564
    %566 = vrot.lane.b32.xlu0 %v301, 64
    %v567 = vpop.permute.xlu0 %566
    %568 = vrot.lane.b32.xlu0 %v302, 64
    %v569 = vpop.permute.xlu0 %568
    %570 = vrot.lane.b32.xlu0 %v303, 64
    %v571 = vpop.permute.xlu0 %570
    %572 = vrot.lane.b32.xlu0 %v304, 64
    %v573 = vpop.permute.xlu0 %572
    %574 = vrot.lane.b32.xlu0 %v305, 64
    %v575 = vpop.permute.xlu0 %574
    %576 = vrot.lane.b32.xlu0 %v306, 64
    %v577 = vpop.permute.xlu0 %576
    %578 = vrot.lane.b32.xlu0 %v307, 64
    %v579 = vpop.permute.xlu0 %578
    %v589 = vsel %vm467, %v548, 0
    %v592 = vsel %vm467, %v549, 0
    %v595 = vsel %vm467, %v550, 0
    %v598 = vsel %vm467, %v551, 0
    %v601 = vsel %vm467, %v552, 0
    %v604 = vsel %vm467, %v553, 0
    %v607 = vsel %vm467, %v554, 0
    %v610 = vsel %vm467, %v555, 0
    %612 = vmatprep.subr.mxu0 0.0
    %613 = vmatpush1.msra.mxu0 %v565
    %614 = vmatprep.subr.mxu0 0.0
    %615 = vmatpush1.msra.mxu0 %v567
    %616 = vmatprep.subr.mxu0 0.0
    %617 = vmatpush1.msra.mxu0 %v569
    %618 = vmatprep.subr.mxu0 0.0
    %619 = vmatpush1.msra.mxu0 %v571
    %620 = vmatprep.subr.mxu0 0.0
    %621 = vmatpush1.msra.mxu0 %v573
    %622 = vmatprep.subr.mxu0 0.0
    %623 = vmatpush1.msra.mxu0 %v575
    %624 = vmatprep.subr.mxu0 0.0
    %625 = vmatpush1.msra.mxu0 %v577
    %626 = vmatprep.subr.mxu0 0.0
    %627 = vmatpush1.msra.mxu0 %v579
    %628 = vmatprep.subr.mxu0 0.0
    %629 = vmatpush1.msra.mxu0 0.0
    %630 = vmatprep.subr.mxu0 0.0
    %631 = vmatpush1.msra.mxu0 0.0
    %632 = vmatprep.subr.mxu0 0.0
    %633 = vmatpush1.msra.mxu0 0.0
    %634 = vmatprep.subr.mxu0 0.0
    %635 = vmatpush1.msra.mxu0 0.0
    %636 = vmatprep.subr.mxu0 0.0
    %637 = vmatpush1.msra.mxu0 0.0
    %638 = vmatprep.subr.mxu0 0.0
    %639 = vmatpush1.msra.mxu0 0.0
    %640 = vmatprep.subr.mxu0 0.0
    %641 = vmatpush1.msra.mxu0 0.0
    %642 = vmatprep.subr.mxu0 0.0
    %643 = vmatpush1.msra.mxu0 0.0
    %644 = vmatprep.subr.mxu0 0.0
    %645 = vmatpush1.msra.mxu0 0.0
    %646 = vmatprep.subr.mxu0 0.0
    %647 = vmatpush1.msra.mxu0 0.0
    %648 = vmatprep.subr.mxu0 0.0
    %649 = vmatpush1.msra.mxu0 0.0
    %650 = vmatprep.subr.mxu0 0.0
    %651 = vmatpush1.msra.mxu0 0.0
    %652 = vmatprep.subr.mxu0 0.0
    %653 = vmatpush1.msra.mxu0 0.0
    %654 = vmatprep.subr.mxu0 0.0
    %655 = vmatpush1.msra.mxu0 0.0
    %656 = vmatprep.subr.mxu0 0.0
    %657 = vmatpush1.msra.mxu0 0.0
    %658 = vmatprep.subr.mxu0 0.0
    %659 = vmatpush1.msra.mxu0 0.0
    %660 = vmatprep.subr.mxu0 0.0
    %661 = vmatpush1.msra.mxu0 0.0
    %662 = vmatprep.subr.mxu0 0.0
    %663 = vmatpush1.msra.mxu0 0.0
    %664 = vmatprep.subr.mxu0 0.0
    %665 = vmatpush1.msra.mxu0 0.0
    %666 = vmatprep.subr.mxu0 0.0
    %667 = vmatpush1.msra.mxu0 0.0
    %668 = vmatprep.subr.mxu0 0.0
    %669 = vmatpush1.msra.mxu0 0.0
    %670 = vmatprep.subr.mxu0 0.0
    %671 = vmatpush1.msra.mxu0 0.0
    %672 = vmatprep.subr.mxu0 0.0
    %673 = vmatpush1.msra.mxu0 0.0
    %674 = vmatprep.subr.mxu0 0.0
    %675 = vmatpush1.msra.mxu0 0.0
    %676 = vmatprep.mubr.f32.mxu0 0.0
    %677 = vmatmul.mubr.f32.gmra.mrb[0].mxu0 %v589
    %v678 = vpop.f32.mrb[0].mxu0
    %v679 = vadd.f32 0.0, %v678
    %v680 = vpop.f32.mrb[0].mxu0
    %681 = vmatprep.mubr.f32.mxu0 0.0
    %682 = vmatmul.mubr.f32.gmra.mrb[0].mxu0 %v592
    %v683 = vpop.f32.mrb[0].mxu0
    %v684 = vadd.f32 0.0, %v683
    %v685 = vpop.f32.mrb[0].mxu0
    %686 = vmatprep.mubr.f32.mxu0 0.0
    %687 = vmatmul.mubr.f32.gmra.mrb[0].mxu0 %v595
    %v688 = vpop.f32.mrb[0].mxu0
    %v689 = vadd.f32 0.0, %v688
    %v690 = vpop.f32.mrb[0].mxu0
    %691 = vmatprep.mubr.f32.mxu0 0.0
    %692 = vmatmul.mubr.f32.gmra.mrb[0].mxu0 %v598
    %v693 = vpop.f32.mrb[0].mxu0
    %v694 = vadd.f32 0.0, %v693
    %v695 = vpop.f32.mrb[0].mxu0
    %696 = vmatprep.mubr.f32.mxu0 0.0
    %697 = vmatmul.mubr.f32.gmra.mrb[0].mxu0 %v601
    %v698 = vpop.f32.mrb[0].mxu0
    %v699 = vadd.f32 0.0, %v698
    %v700 = vpop.f32.mrb[0].mxu0
    %701 = vmatprep.mubr.f32.mxu0 0.0
    %702 = vmatmul.mubr.f32.gmra.mrb[0].mxu0 %v604
    %v703 = vpop.f32.mrb[0].mxu0
    %v704 = vadd.f32 0.0, %v703
    %v705 = vpop.f32.mrb[0].mxu0
    %706 = vmatprep.mubr.f32.mxu0 0.0
    %707 = vmatmul.mubr.f32.gmra.mrb[0].mxu0 %v607
    %v708 = vpop.f32.mrb[0].mxu0
    %v709 = vadd.f32 0.0, %v708
    %v710 = vpop.f32.mrb[0].mxu0
    %711 = vmatprep.mubr.f32.mxu0 0.0
    %712 = vmatmul.mubr.f32.gmra.mrb[0].mxu0 %v610
    %v713 = vpop.f32.mrb[0].mxu0
    %v714 = vadd.f32 0.0, %v713
    %v715 = vpop.f32.mrb[0].mxu0
    %716 = vdwg.mxu0
    %v717 = vadd.f32 %v679, %v689
    %v718 = vadd.f32 %v684, %v694
    %v719 = vadd.f32 %v717, %v699
    %v720 = vadd.f32 %v718, %v704
    %v721 = vadd.f32 %v719, %v709
    %v722 = vadd.f32 %v720, %v714
    %v723 = vld [vmem:[%s5] sm:$0xff]
    %v724 = vld [vmem:[%s5 + $0x8] sm:$0xff]
    %v725 = vld [vmem:[%s5 + $0x10] sm:$0xff]
    %v726 = vld [vmem:[%s5 + $0x18] sm:$0xff]
    %v728 = vsel %vm78, %v721, 0
    %v731 = vsel %vm78, %v722, 0
    %733 = vmatprep.subr.mxu0 0.0
    %734 = vmatpush1.msra.mxu0 %v723
    %735 = vmatprep.subr.mxu0 0.0
    %736 = vmatpush1.msra.mxu0 %v724
    %737 = vmatprep.subr.mxu0 0.0
    %738 = vmatpush1.msra.mxu0 %v725
    %739 = vmatprep.subr.mxu0 0.0
    %740 = vmatpush1.msra.mxu0 %v726
    %741 = vmatprep.subr.mxu0 0.0
    %742 = vmatpush1.msra.mxu0 0.0
    %743 = vmatprep.subr.mxu0 0.0
    %744 = vmatpush1.msra.mxu0 0.0
    %745 = vmatprep.subr.mxu0 0.0
    %746 = vmatpush1.msra.mxu0 0.0
    %747 = vmatprep.subr.mxu0 0.0
    %748 = vmatpush1.msra.mxu0 0.0
    %749 = vmatprep.subr.mxu0 0.0
    %750 = vmatpush1.msra.mxu0 0.0
    %751 = vmatprep.subr.mxu0 0.0
    %752 = vmatpush1.msra.mxu0 0.0
    %753 = vmatprep.subr.mxu0 0.0
    %754 = vmatpush1.msra.mxu0 0.0
    %755 = vmatprep.subr.mxu0 0.0
    %756 = vmatpush1.msra.mxu0 0.0
    %757 = vmatprep.subr.mxu0 0.0
    %758 = vmatpush1.msra.mxu0 0.0
    %759 = vmatprep.subr.mxu0 0.0
    %760 = vmatpush1.msra.mxu0 0.0
    %761 = vmatprep.subr.mxu0 0.0
    %762 = vmatpush1.msra.mxu0 0.0
    %763 = vmatprep.subr.mxu0 0.0
    %764 = vmatpush1.msra.mxu0 0.0
    %765 = vmatprep.subr.mxu0 0.0
    %766 = vmatpush1.msra.mxu0 0.0
    %767 = vmatprep.subr.mxu0 0.0
    %768 = vmatpush1.msra.mxu0 0.0
    %769 = vmatprep.subr.mxu0 0.0
    %770 = vmatpush1.msra.mxu0 0.0
    %771 = vmatprep.subr.mxu0 0.0
    %772 = vmatpush1.msra.mxu0 0.0
    %773 = vmatprep.subr.mxu0 0.0
    %774 = vmatpush1.msra.mxu0 0.0
    %775 = vmatprep.subr.mxu0 0.0
    %776 = vmatpush1.msra.mxu0 0.0
    %777 = vmatprep.subr.mxu0 0.0
    %778 = vmatpush1.msra.mxu0 0.0
    %779 = vmatprep.subr.mxu0 0.0
    %780 = vmatpush1.msra.mxu0 0.0
    %781 = vmatprep.subr.mxu0 0.0
    %782 = vmatpush1.msra.mxu0 0.0
    %783 = vmatprep.subr.mxu0 0.0
    %784 = vmatpush1.msra.mxu0 0.0
    %785 = vmatprep.subr.mxu0 0.0
    %786 = vmatpush1.msra.mxu0 0.0
    %787 = vmatprep.subr.mxu0 0.0
    %788 = vmatpush1.msra.mxu0 0.0
    %789 = vmatprep.subr.mxu0 0.0
    %790 = vmatpush1.msra.mxu0 0.0
    %791 = vmatprep.subr.mxu0 0.0
    %792 = vmatpush1.msra.mxu0 0.0
    %793 = vmatprep.subr.mxu0 0.0
    %794 = vmatpush1.msra.mxu0 0.0
    %795 = vmatprep.subr.mxu0 0.0
    %796 = vmatpush1.msra.mxu0 0.0
    %797 = vmatprep.mubr.f32.mxu0 0.0
    %798 = vmatmul.mubr.f32.gmra.mrb[0].mxu0 %v728
    %v799 = vpop.f32.mrb[0].mxu0
    %v800 = vadd.f32 0.0, %v799
    %v801 = vpop.f32.mrb[0].mxu0
    %802 = vmatprep.mubr.f32.mxu0 0.0
    %803 = vmatmul.mubr.f32.gmra.mrb[0].mxu0 %v731
    %v804 = vpop.f32.mrb[0].mxu0
    %v805 = vadd.f32 0.0, %v804
    %v806 = vpop.f32.mrb[0].mxu0
    %807 = vdwg.mxu0
    %v808 = vadd.f32 %v74, %v800
    %v809 = vadd.f32 %v75, %v805
    %v810 = vld [vmem:[%s6] sm:$0x1]
    %v812 = vlaneseq
    %v813 = vshrl.u32 %v812, 7
    %v814 = vsub.s32 0, %v813
    %v815 = vrot.slane %v810, %v814
    %v817 = vadd.f32 %v808, %v815
    %v818 = vadd.f32 %v809, %v815
    %v819 = vld [vmem:[%s13] sm:$0x1]
    %v820 = vld [vmem:[%s14] sm:$0x1]
    %v821 = vsel %vm78, %v817, 0.0
    %822 = vadd.xlane.f32.xlu0 %v821
    %v823 = vpop.xlane.xlu0 %822
    %v824 = vsel %vm78, %v818, 0.0
    %825 = vadd.xlane.f32.xlu0 %v824
    %v826 = vpop.xlane.xlu0 %825
    %v827 = vmul.f32 %v823, %v85
    %v828 = vmul.f32 %v826, %v85
    %v829 = vsub.f32 %v817, %v827
    %v830 = vsub.f32 %v818, %v828
    %v831 = vmul.f32 %v829, %v829
    %v832 = vmul.f32 %v830, %v830
    %v833 = vsel %vm78, %v831, 0.0
    %834 = vadd.xlane.f32.xlu0 %v833
    %v835 = vpop.xlane.xlu0 %834
    %v836 = vsel %vm78, %v832, 0.0
    %837 = vadd.xlane.f32.xlu0 %v836
    %v838 = vpop.xlane.xlu0 %837
    %v839 = vmul.f32 %v835, 0.032258064
    %v840 = vmul.f32 %v838, 0.032258064
    %v841 = vrsqrt.pop %v839
    %v842 = vmul.f32 %v839, %v841
    %vm843 = vcmp.eq.f32.partialorder %v839, inf
    %v844 = vsel %vm843, %v839, %v842
    %vm845 = vcmp.eq.f32.partialorder %v839, 0.0
    %v846 = vand.u32 %v839, 2147483648
    %v847 = vsel %vm845, %v846, %v844
    %v848 = vrsqrt.pop %v840
    %v849 = vmul.f32 %v840, %v848
    %vm850 = vcmp.eq.f32.partialorder %v840, inf
    %v851 = vsel %vm850, %v840, %v849
    %vm852 = vcmp.eq.f32.partialorder %v840, 0.0
    %v853 = vand.u32 %v840, 2147483648
    %v854 = vsel %vm852, %v853, %v851
    %v855 = vadd.f32 %v847, 1e-06
    %v856 = vadd.f32 %v854, 1e-06
    %v857 = vrcp.pop %v855
    %v858 = vrcp.pop %v856
    %v860 = vlaneseq
    %v861 = vshrl.u32 %v860, 7
    %v862 = vsub.s32 0, %v861
    %v863 = vrot.slane %v819, %v862
    %v865 = vmul.f32 %v863, %v829
    %v866 = vmul.f32 %v863, %v830
    %v867 = vmul.f32 %v865, %v857
    %v868 = vmul.f32 %v866, %v858
    %v870 = vlaneseq
    %v871 = vshrl.u32 %v870, 7
    %v872 = vsub.s32 0, %v871
    %v873 = vrot.slane %v820, %v872
    %v875 = vadd.f32 %v867, %v873
    %v876 = vadd.f32 %v868, %v873
    %v877 = vld [vmem:[%s9] sm:$0xff]
    %v878 = vld [vmem:[%s9 + $0x8] sm:$0xff]
    %v879 = vld [vmem:[%s9 + $0x10] sm:$0xff]
    %v880 = vld [vmem:[%s9 + $0x18] sm:$0xff]
    %v881 = vld [vmem:[%s10] sm:$0x1]
    %v883 = vlaneseq
    %v884 = vshrl.u32 %v883, 7
    %v885 = vsub.s32 0, %v884
    %v886 = vrot.slane %v881, %v885
    %v889 = vsel %vm78, %v875, 0
    %v892 = vsel %vm78, %v876, 0
    %894 = vmatprep.subr.mxu0 0.0
    %895 = vmatpush1.msra.mxu0 %v877
    %896 = vmatprep.subr.mxu0 0.0
    %897 = vmatpush1.msra.mxu0 %v878
    %898 = vmatprep.subr.mxu0 0.0
    %899 = vmatpush1.msra.mxu0 %v879
    %900 = vmatprep.subr.mxu0 0.0
    %901 = vmatpush1.msra.mxu0 %v880
    %902 = vmatprep.subr.mxu0 0.0
    %903 = vmatpush1.msra.mxu0 0.0
    %904 = vmatprep.subr.mxu0 0.0
    %905 = vmatpush1.msra.mxu0 0.0
    %906 = vmatprep.subr.mxu0 0.0
    %907 = vmatpush1.msra.mxu0 0.0
    %908 = vmatprep.subr.mxu0 0.0
    %909 = vmatpush1.msra.mxu0 0.0
    %910 = vmatprep.subr.mxu0 0.0
    %911 = vmatpush1.msra.mxu0 0.0
    %912 = vmatprep.subr.mxu0 0.0
    %913 = vmatpush1.msra.mxu0 0.0
    %914 = vmatprep.subr.mxu0 0.0
    %915 = vmatpush1.msra.mxu0 0.0
    %916 = vmatprep.subr.mxu0 0.0
    %917 = vmatpush1.msra.mxu0 0.0
    %918 = vmatprep.subr.mxu0 0.0
    %919 = vmatpush1.msra.mxu0 0.0
    %920 = vmatprep.subr.mxu0 0.0
    %921 = vmatpush1.msra.mxu0 0.0
    %922 = vmatprep.subr.mxu0 0.0
    %923 = vmatpush1.msra.mxu0 0.0
    %924 = vmatprep.subr.mxu0 0.0
    %925 = vmatpush1.msra.mxu0 0.0
    %926 = vmatprep.subr.mxu0 0.0
    %927 = vmatpush1.msra.mxu0 0.0
    %928 = vmatprep.subr.mxu0 0.0
    %929 = vmatpush1.msra.mxu0 0.0
    %930 = vmatprep.subr.mxu0 0.0
    %931 = vmatpush1.msra.mxu0 0.0
    %932 = vmatprep.subr.mxu0 0.0
    %933 = vmatpush1.msra.mxu0 0.0
    %934 = vmatprep.subr.mxu0 0.0
    %935 = vmatpush1.msra.mxu0 0.0
    %936 = vmatprep.subr.mxu0 0.0
    %937 = vmatpush1.msra.mxu0 0.0
    %938 = vmatprep.subr.mxu0 0.0
    %939 = vmatpush1.msra.mxu0 0.0
    %940 = vmatprep.subr.mxu0 0.0
    %941 = vmatpush1.msra.mxu0 0.0
    %942 = vmatprep.subr.mxu0 0.0
    %943 = vmatpush1.msra.mxu0 0.0
    %944 = vmatprep.subr.mxu0 0.0
    %945 = vmatpush1.msra.mxu0 0.0
    %946 = vmatprep.subr.mxu0 0.0
    %947 = vmatpush1.msra.mxu0 0.0
    %948 = vmatprep.subr.mxu0 0.0
    %949 = vmatpush1.msra.mxu0 0.0
    %950 = vmatprep.subr.mxu0 0.0
    %951 = vmatpush1.msra.mxu0 0.0
    %952 = vmatprep.subr.mxu0 0.0
    %953 = vmatpush1.msra.mxu0 0.0
    %954 = vmatprep.subr.mxu0 0.0
    %955 = vmatpush1.msra.mxu0 0.0
    %956 = vmatprep.subr.mxu0 0.0
    %957 = vmatpush1.msra.mxu0 0.0
    %958 = vmatprep.mubr.f32.mxu0 0.0
    %959 = vmatmul.mubr.f32.gmra.mrb[0].mxu0 %v889
    %v960 = vpop.f32.mrb[0].mxu0
    %v961 = vadd.f32 %v886, %v960
    %v962 = vpop.f32.mrb[0].mxu0
    %963 = vmatprep.mubr.f32.mxu0 0.0
    %964 = vmatmul.mubr.f32.gmra.mrb[0].mxu0 %v892
    %v965 = vpop.f32.mrb[0].mxu0
    %v966 = vadd.f32 %v886, %v965
    %v967 = vpop.f32.mrb[0].mxu0
    %968 = vdwg.mxu0
    %v969 = vmax.f32 %v961, 0.0
    %v970 = vmax.f32 %v966, 0.0
    %v971 = vld [vmem:[%s11] sm:$0xff]
    %v972 = vld [vmem:[%s11 + $0x8] sm:$0xff]
    %v973 = vld [vmem:[%s11 + $0x10] sm:$0xff]
    %v974 = vld [vmem:[%s11 + $0x18] sm:$0xff]
    %v975 = vld [vmem:[%s11 + $0x20] sm:$0xff]
    %v976 = vld [vmem:[%s11 + $0x28] sm:$0xff]
    %v977 = vld [vmem:[%s11 + $0x30] sm:$0xff]
    %v978 = vld [vmem:[%s11 + $0x38] sm:$0xff]
    %v980 = vsel %vm467, %v969, 0
    %v983 = vsel %vm467, %v970, 0
    %985 = vmatprep.subr.mxu0 0.0
    %986 = vmatpush1.msra.mxu0 %v971
    %987 = vmatprep.subr.mxu0 0.0
    %988 = vmatpush1.msra.mxu0 %v972
    %989 = vmatprep.subr.mxu0 0.0
    %990 = vmatpush1.msra.mxu0 %v973
    %991 = vmatprep.subr.mxu0 0.0
    %992 = vmatpush1.msra.mxu0 %v974
    %993 = vmatprep.subr.mxu0 0.0
    %994 = vmatpush1.msra.mxu0 %v975
    %995 = vmatprep.subr.mxu0 0.0
    %996 = vmatpush1.msra.mxu0 %v976
    %997 = vmatprep.subr.mxu0 0.0
    %998 = vmatpush1.msra.mxu0 %v977
    %999 = vmatprep.subr.mxu0 0.0
    %1000 = vmatpush1.msra.mxu0 %v978
    %1001 = vmatprep.subr.mxu0 0.0
    %1002 = vmatpush1.msra.mxu0 0.0
    %1003 = vmatprep.subr.mxu0 0.0
    %1004 = vmatpush1.msra.mxu0 0.0
    %1005 = vmatprep.subr.mxu0 0.0
    %1006 = vmatpush1.msra.mxu0 0.0
    %1007 = vmatprep.subr.mxu0 0.0
    %1008 = vmatpush1.msra.mxu0 0.0
    %1009 = vmatprep.subr.mxu0 0.0
    %1010 = vmatpush1.msra.mxu0 0.0
    %1011 = vmatprep.subr.mxu0 0.0
    %1012 = vmatpush1.msra.mxu0 0.0
    %1013 = vmatprep.subr.mxu0 0.0
    %1014 = vmatpush1.msra.mxu0 0.0
    %1015 = vmatprep.subr.mxu0 0.0
    %1016 = vmatpush1.msra.mxu0 0.0
    %1017 = vmatprep.subr.mxu0 0.0
    %1018 = vmatpush1.msra.mxu0 0.0
    %1019 = vmatprep.subr.mxu0 0.0
    %1020 = vmatpush1.msra.mxu0 0.0
    %1021 = vmatprep.subr.mxu0 0.0
    %1022 = vmatpush1.msra.mxu0 0.0
    %1023 = vmatprep.subr.mxu0 0.0
    %1024 = vmatpush1.msra.mxu0 0.0
    %1025 = vmatprep.subr.mxu0 0.0
    %1026 = vmatpush1.msra.mxu0 0.0
    %1027 = vmatprep.subr.mxu0 0.0
    %1028 = vmatpush1.msra.mxu0 0.0
    %1029 = vmatprep.subr.mxu0 0.0
    %1030 = vmatpush1.msra.mxu0 0.0
    %1031 = vmatprep.subr.mxu0 0.0
    %1032 = vmatpush1.msra.mxu0 0.0
    %1033 = vmatprep.subr.mxu0 0.0
    %1034 = vmatpush1.msra.mxu0 0.0
    %1035 = vmatprep.subr.mxu0 0.0
    %1036 = vmatpush1.msra.mxu0 0.0
    %1037 = vmatprep.subr.mxu0 0.0
    %1038 = vmatpush1.msra.mxu0 0.0
    %1039 = vmatprep.subr.mxu0 0.0
    %1040 = vmatpush1.msra.mxu0 0.0
    %1041 = vmatprep.subr.mxu0 0.0
    %1042 = vmatpush1.msra.mxu0 0.0
    %1043 = vmatprep.subr.mxu0 0.0
    %1044 = vmatpush1.msra.mxu0 0.0
    %1045 = vmatprep.subr.mxu0 0.0
    %1046 = vmatpush1.msra.mxu0 0.0
    %1047 = vmatprep.subr.mxu0 0.0
    %1048 = vmatpush1.msra.mxu0 0.0
    %1049 = vmatprep.mubr.f32.mxu0 0.0
    %1050 = vmatmul.mubr.f32.gmra.mrb[0].mxu0 %v980
    %v1051 = vpop.f32.mrb[0].mxu0
    %v1052 = vadd.f32 0.0, %v1051
    %v1053 = vpop.f32.mrb[0].mxu0
    %1054 = vmatprep.mubr.f32.mxu0 0.0
    %1055 = vmatmul.mubr.f32.gmra.mrb[0].mxu0 %v983
    %v1056 = vpop.f32.mrb[0].mxu0
    %v1057 = vadd.f32 0.0, %v1056
    %v1058 = vpop.f32.mrb[0].mxu0
    %1059 = vdwg.mxu0
    %v1060 = vadd.f32 %v817, %v1052
    %v1061 = vadd.f32 %v818, %v1057
    %v1062 = vld [vmem:[%s12] sm:$0x1]
    %v1064 = vlaneseq
    %v1065 = vshrl.u32 %v1064, 7
    %v1066 = vsub.s32 0, %v1065
    %v1067 = vrot.slane %v1062, %v1066
    %v1069 = vadd.f32 %v1060, %v1067
    %v1070 = vadd.f32 %v1061, %v1067
    %1071 = vst.msk [vmem:[#allocation2] sm:$0xff] %vm78, %v1069
    %1072 = vst.msk [vmem:[#allocation2 + $0x8] sm:$0xff] %vm78, %v1070
    // Predicated region
    $region70: #{tpu_custom_call.1} parent=1 // pred_check
      %p1073 = pneg %p65
    $region71: #{tpu_custom_call.1} parent=1 // pred_check_branch
      %1075 = sbr.rel (%p1073) target = $region73
    $region72: #{tpu_custom_call.1} parent=1 // pred_region
      %v1076 = vld [vmem:[#allocation2] sm:$0xf]
      %vm1077 = vcmask 257024
      %1078 = vst.msk [vmem:[#allocation6] sm:$0xf] %vm1077, %v1076
      %v1079 = vld [vmem:[#allocation2 + $0x4] sm:$0xf]
      %1081 = vrot.lane.b32.xlu0 %v1079, 32
      %v1082 = vpop.permute.xlu0 %1081
      %vm1084 = vcmask 519424
      %1085 = vst.msk [vmem:[#allocation6] sm:$0xf] %vm1084, %v1082
      %v1086 = vld [vmem:[#allocation2 + $0x8] sm:$0xf]
      %1088 = vrot.lane.b32.xlu0 %v1086, 64
      %v1089 = vpop.permute.xlu0 %1088
      %vm1091 = vcmask 781824
      %1092 = vst.msk [vmem:[#allocation6] sm:$0xf] %vm1091, %v1089
      %v1093 = vld [vmem:[#allocation2 + $0xc] sm:$0xf]
      %1095 = vrot.lane.b32.xlu0 %v1093, 96
      %v1096 = vpop.permute.xlu0 %1095
      %vm1098 = vcmask 1044224
      %1099 = vst.msk [vmem:[#allocation6] sm:$0xf] %vm1098, %v1096
    $region73: #{tpu_custom_call.1} parent=1 // pred_fallthru
      _
    // Predicated region
    $region74: #{tpu_custom_call.1} parent=1 // pred_check
      _
    $region75: #{tpu_custom_call.1} parent=1 // pred_check_branch
      %1101 = sbr.rel (0) target = $region77
    $region76: #{tpu_custom_call.1} parent=1 // pred_region
      %s1103 = ssub.s32 64, 64
      %1104 = vsyncadd [#allocation5], %s1103
      %s1106 = sshll.u32 [#allocation6], 4
      %s1107 = int_to_ptr.vmem [resolvable:$true] %s1106
      %1109 = dma.vmem_to_hbm [thread:$0]  %s1107, 64, %s15, [#allocation5]
    $region77: #{tpu_custom_call.1} parent=1 // pred_fallthru
      _
    // Predicated region
    $region78: #{tpu_custom_call.1} parent=1 // pred_check
      _
    $region79: #{tpu_custom_call.1} parent=1 // pred_check_branch
      %1111 = sbr.rel (0) target = $region81
    $region80: #{tpu_custom_call.1} parent=1 // pred_region
      %1112 = dma.done [#allocation5], 64
    $region81: #{tpu_custom_call.1} parent=1 // pred_fallthru
      _
    %1113 = vsyncpa [#allocation4], 1
    %1114 = vsyncpa [#allocation5], 1

</llo_original>
